<compile_context>
chip_gen: v6e
topology: v6e:2x2x1
jax: 0.10.0
libtpu: 0.0.40
codegen_flags: <defaults>
</compile_context>

<pallas_src>
import functools

import jax
import jax.numpy as jnp
import numpy as np
from jax.experimental import pallas as pl
from jax.experimental.pallas import tpu as pltpu


# ----------------------------- small helpers -------------------------------

def _round_up(x, m):
    return ((x + m - 1) // m) * m


def _lane_pack_factor(c):
    """How many (M, C) rows we pack into one 128-lane dense row."""
    if c < 128 and 128 % c == 0:
        return 128 // c
    return 1


# ----------------------------- Pallas kernels ------------------------------

def _mm_stats_kernel(a_ref, b_ref, y_ref, st_ref):
    """Lane-dense matmul + per-step partial channel sum / sumsq."""
    y = jnp.dot(a_ref[...], b_ref[...], preferred_element_type=jnp.float32)
    y_ref[...] = y
    s = jnp.sum(y, axis=0, keepdims=True)
    q = jnp.sum(y * y, axis=0, keepdims=True)
    z = jnp.zeros_like(s)
    st_ref[...] = jnp.concatenate([s, q, z, z, z, z, z, z], axis=0)


def _mm_stats_sc_kernel(a_ref, b_ref, xs_ref, wsc_ref, y_ref, st_ref):
    """conv2 matmul + its stats + shortcut (1x1 conv) stats, shortcut never stored."""
    y = jnp.dot(a_ref[...], b_ref[...], preferred_element_type=jnp.float32)
    ysc = jnp.dot(xs_ref[...], wsc_ref[...], preferred_element_type=jnp.float32)
    y_ref[...] = y
    sy = jnp.sum(y, axis=0, keepdims=True)
    qy = jnp.sum(y * y, axis=0, keepdims=True)
    sc = jnp.sum(ysc, axis=0, keepdims=True)
    qc = jnp.sum(ysc * ysc, axis=0, keepdims=True)
    z = jnp.zeros_like(sy)
    st_ref[...] = jnp.concatenate([sy, qy, sc, qc, z, z, z, z], axis=0)


def _bn_relu_kernel(y_ref, s_ref, b_ref, o_ref):
    o_ref[...] = jnp.maximum(y_ref[...] * s_ref[...] + b_ref[...],
                             0.0).astype(o_ref.dtype)


def _bn_add_sc_relu_kernel(y2_ref, xs_ref, wsc_ref, s2_ref, b2_ref,
                           ssc_ref, bsc_ref, o_ref):
    main = y2_ref[...] * s2_ref[...] + b2_ref[...]
    ysc = jnp.dot(xs_ref[...], wsc_ref[...], preferred_element_type=jnp.float32)
    o_ref[...] = jnp.maximum(main + ysc * ssc_ref[...] + bsc_ref[...], 0.0)


# ----------------------------- Pallas wrappers ------------------------------

_VMEM_LIMIT = 32 * 1024 * 1024  # safe on v5e/v6e/v7x; tiles sized well under this


def matmul_stats(a_dense, b_bd, *, tg):
    mg, ka = a_dense.shape
    kb, lanes = b_bd.shape
    assert mg % tg == 0 and ka == kb
    grid = mg // tg
    return pl.pallas_call(
        _mm_stats_kernel,
        out_shape=(jax.ShapeDtypeStruct((mg, lanes), jnp.float32),
                   jax.ShapeDtypeStruct((grid * 8, lanes), jnp.float32)),
        grid_spec=pltpu.PrefetchScalarGridSpec(
            num_scalar_prefetch=0,
            grid=(grid,),
            in_specs=[pl.BlockSpec((tg, ka), lambda i: (i, 0)),
                      pl.BlockSpec((kb, lanes), lambda i: (0, 0))],
            out_specs=(pl.BlockSpec((tg, lanes), lambda i: (i, 0)),
                       pl.BlockSpec((8, lanes), lambda i: (i, 0))),
        ),
        compiler_params=pltpu.CompilerParams(
            dimension_semantics=("parallel",),
            vmem_limit_bytes=_VMEM_LIMIT),
    )(a_dense, b_bd)


def matmul_stats_sc(a_dense, b_bd, xs_dense, wsc_bd, *, tg):
    mg, ka = a_dense.shape
    kb, lanes = b_bd.shape
    _, kx = xs_dense.shape
    assert mg % tg == 0 and ka == kb
    grid = mg // tg
    return pl.pallas_call(
        _mm_stats_sc_kernel,
        out_shape=(jax.ShapeDtypeStruct((mg, lanes), jnp.float32),
                   jax.ShapeDtypeStruct((grid * 8, lanes), jnp.float32)),
        grid_spec=pltpu.PrefetchScalarGridSpec(
            num_scalar_prefetch=0,
            grid=(grid,),
            in_specs=[pl.BlockSpec((tg, ka), lambda i: (i, 0)),
                      pl.BlockSpec((kb, lanes), lambda i: (0, 0)),
                      pl.BlockSpec((tg, kx), lambda i: (i, 0)),
                      pl.BlockSpec((kx, lanes), lambda i: (0, 0))],
            out_specs=(pl.BlockSpec((tg, lanes), lambda i: (i, 0)),
                       pl.BlockSpec((8, lanes), lambda i: (i, 0))),
        ),
        compiler_params=pltpu.CompilerParams(
            dimension_semantics=("parallel",),
            vmem_limit_bytes=_VMEM_LIMIT),
    )(a_dense, b_bd, xs_dense, wsc_bd)


def bn_relu(y_dense, scale_t, bias_t, *, tg, out_dtype):
    mg, lanes = y_dense.shape
    grid = mg // tg
    return pl.pallas_call(
        _bn_relu_kernel,
        out_shape=jax.ShapeDtypeStruct((mg, lanes), out_dtype),
        grid_spec=pltpu.PrefetchScalarGridSpec(
            num_scalar_prefetch=0,
            grid=(grid,),
            in_specs=[pl.BlockSpec((tg, lanes), lambda i: (i, 0)),
                      pl.BlockSpec((1, lanes), lambda i: (0, 0)),
                      pl.BlockSpec((1, lanes), lambda i: (0, 0))],
            out_specs=pl.BlockSpec((tg, lanes), lambda i: (i, 0)),
        ),
        compiler_params=pltpu.CompilerParams(
            dimension_semantics=("parallel",),
            vmem_limit_bytes=_VMEM_LIMIT),
    )(y_dense, scale_t, bias_t)


def bn_add_sc_relu(y2_d, xs_d, wsc_bd, s2_t, b2_t, ssc_t, bsc_t, *, tg):
    mg, lanes = y2_d.shape
    _, kx = xs_d.shape
    grid = mg // tg
    return pl.pallas_call(
        _bn_add_sc_relu_kernel,
        out_shape=jax.ShapeDtypeStruct((mg, lanes), jnp.float32),
        grid_spec=pltpu.PrefetchScalarGridSpec(
            num_scalar_prefetch=0,
            grid=(grid,),
            in_specs=[pl.BlockSpec((tg, lanes), lambda i: (i, 0)),
                      pl.BlockSpec((tg, kx), lambda i: (i, 0)),
                      pl.BlockSpec((kx, lanes), lambda i: (0, 0)),
                      pl.BlockSpec((1, lanes), lambda i: (0, 0)),
                      pl.BlockSpec((1, lanes), lambda i: (0, 0)),
                      pl.BlockSpec((1, lanes), lambda i: (0, 0)),
                      pl.BlockSpec((1, lanes), lambda i: (0, 0))],
            out_specs=pl.BlockSpec((tg, lanes), lambda i: (i, 0)),
        ),
        compiler_params=pltpu.CompilerParams(
            dimension_semantics=("parallel",),
            vmem_limit_bytes=_VMEM_LIMIT),
    )(y2_d, xs_d, wsc_bd, s2_t, b2_t, ssc_t, bsc_t)


# ------------------------------ JAX glue -----------------------------------

def im2col(x_nhwc, k, stride, pad):
    """Extract (ky, kx, cin)-ordered patches -> (N*Ho*Wo, k*k*Cin)."""
    N, H, W, C = x_nhwc.shape
    xp = jnp.pad(x_nhwc, ((0, 0), (pad, pad), (pad, pad), (0, 0)))
    Ho = (H + 2 * pad - k) // stride + 1
    Wo = (W + 2 * pad - k) // stride + 1
    cols = []
    for ky in range(k):
        for kx in range(k):
            cols.append(xp[:, ky:ky + (Ho - 1) * stride + 1:stride,
                           kx:kx + (Wo - 1) * stride + 1:stride, :])
    patches = jnp.concatenate(cols, axis=-1)  # (N, Ho, Wo, k*k*C)
    return patches.reshape(N * Ho * Wo, k * k * C), (Ho, Wo)


def weight_to_matrix(w_oihw):
    """(Cout, Cin, Kh, Kw) -> (Kh*Kw*Cin, Cout), matching im2col ordering."""
    Cout, Cin, Kh, Kw = w_oihw.shape
    return jnp.transpose(w_oihw, (2, 3, 1, 0)).reshape(Kh * Kw * Cin, Cout)


def _block_diag(mat, pack, dtype):
    """kron(I_pack, mat): maps lane-dense rows straight through the matmul."""
    return jnp.kron(jnp.eye(pack, dtype=jnp.float32),
                    mat.astype(jnp.float32)).astype(dtype)


def _to_dense_rows(mat, m_pad, pack):
    """Zero-pad rows to m_pad and view (m_pad, K) as lane-dense (m_pad/pack, pack*K)."""
    m, k = mat.shape
    matp = jnp.pad(mat, ((0, m_pad - m), (0, 0)))
    return matp.reshape(m_pad // pack, pack * k)


def _fold_bn(sum_lanes, sq_lanes, count, gamma, beta, pack, c, eps=1e-5):
    """Training-mode BN fold to per-channel scale/bias, tiled to lane-dense width."""
    s = sum_lanes.reshape(pack, c).sum(axis=0)
    q = sq_lanes.reshape(pack, c).sum(axis=0)
    mean = s / count
    # TODO(synk): E[y^2]-mean^2 is cancellation-prone for very large activations;
    # fine at these magnitudes / tolerances (matches torch training-mode BN fwd).
    var = q / count - mean * mean
    scale = gamma * jax.lax.rsqrt(var + eps)
    bias = beta - mean * scale
    tile = lambda v: jnp.tile(v, pack).reshape(1, pack * c).astype(jnp.float32)
    return tile(scale), tile(bias)


def basic_block_forward(x_nchw, p, stride, *, compute_dtype=jnp.bfloat16,
                        tile_rows=128):
    """Pallas implementation of BasicBlock(option='B').forward (training-mode BN)."""
    x = jnp.transpose(x_nchw, (0, 2, 3, 1)).astype(jnp.float32)  # NHWC
    N, H, W, cin = x.shape
    c = p['w1'].shape[0]                       # planes
    pack = _lane_pack_factor(c)
    lanes = pack * c

    # ---- conv1 (3x3, stride, pad=1) as lane-dense im2col matmul + fused stats
    a1, (ho, wo) = im2col(x, 3, stride, 1)
    m = N * ho * wo
    mg = -(-m // pack)                         # lane-dense rows actually needed
    tg = min(tile_rows, _round_up(mg, 8))      # big tiles, (8,128)-aligned
    grid = -(-mg // tg)
    mg_pad = grid * tg
    m_pad = mg_pad * pack

    a1_d = _to_dense_rows(a1, m_pad, pack).astype(compute_dtype)
    b1_bd = _block_diag(weight_to_matrix(p['w1']), pack, compute_dtype)
    y1_d, st1 = matmul_stats(a1_d, b1_bd, tg=tg)
    st1 = st1.reshape(grid, 8, lanes).sum(axis=0)
    s1_t, b1_t = _fold_bn(st1[0], st1[1], m, p['g1'], p['be1'], pack, c)
    out1_d = bn_relu(y1_d, s1_t, b1_t, tg=tg, out_dtype=compute_dtype)

    # ---- conv2 input (im2col of bn1/relu output) and shortcut operand
    out1 = out1_d.reshape(m_pad, c)[:m].reshape(N, ho, wo, c)
    a2, _ = im2col(out1, 3, 1, 1)
    a2_d = _to_dense_rows(a2, m_pad, pack).astype(compute_dtype)
    b2_bd = _block_diag(weight_to_matrix(p['w2']), pack, compute_dtype)

    xs = x[:, ::stride, ::stride, :].reshape(-1, cin)   # 1x1-conv (stride) input
    xs_d = _to_dense_rows(xs, m_pad, pack).astype(compute_dtype)
    ws_mat = jnp.transpose(p['ws'][:, :, 0, 0], (1, 0))  # (cin, c)
    wsc_bd = _block_diag(ws_mat, pack, compute_dtype)

    # ---- conv2 matmul + conv2 stats + shortcut stats, one pass (ysc never stored)
    y2_d, st2 = matmul_stats_sc(a2_d, b2_bd, xs_d, wsc_bd, tg=tg)
    st2 = st2.reshape(grid, 8, lanes).sum(axis=0)
    s2_t, b2_t = _fold_bn(st2[0], st2[1], m, p['g2'], p['be2'], pack, c)
    ssc_t, bsc_t = _fold_bn(st2[2], st2[3], m, p['gs'], p['bes'], pack, c)

    # ---- bn2(conv2) + bn_sc(1x1 shortcut recomputed on the idle MXU) + relu
    out_d = bn_add_sc_relu(y2_d, xs_d, wsc_bd, s2_t, b2_t, ssc_t, bsc_t, tg=tg)
    out = out_d.reshape(m_pad, c)[:m].reshape(N, ho, wo, c)
    return jnp.transpose(out, (0, 3, 1, 2))             # back to NCHW


# --------------------------- pure-JAX reference -----------------------------

def ref_forward(x, p, stride):
    def conv(z, w, s, pad):
        return jax.lax.conv_general_dilated(
            z, w, (s, s), [(pad, pad), (pad, pad)],
            dimension_numbers=('NCHW', 'OIHW', 'NCHW'))

    def bn(y, g, b, eps=1e-5):
        mean = jnp.mean(y, axis=(0, 2, 3), keepdims=True)
        var = jnp.mean((y - mean) ** 2, axis=(0, 2, 3), keepdims=True)
        return (g.reshape(1, -1, 1, 1) * (y - mean) / jnp.sqrt(var + eps)
                + b.reshape(1, -1, 1, 1))

    out = jax.nn.relu(bn(conv(x, p['w1'], stride, 1), p['g1'], p['be1']))
    out = bn(conv(out, p['w2'], 1, 1), p['g2'], p['be2'])
    sc = bn(conv(x, p['ws'], stride, 0), p['gs'], p['bes'])
    return jax.nn.relu(out + sc)


# --------------------------------- main -------------------------------------

if __name__ == "__main__":
    key = jax.random.PRNGKey(0)
    N, in_planes, H, W = 2, 4, 16, 16
    planes, stride = 8, 2

    ks = jax.random.split(key, 10)
    params = {
        'w1':  0.1 * jax.random.normal(ks[0], (planes, in_planes, 3, 3), jnp.float32),
        'g1':  0.5 + jax.random.uniform(ks[1], (planes,), jnp.float32),
        'be1': 0.1 * jax.random.normal(ks[2], (planes,), jnp.float32),
        'w2':  0.1 * jax.random.normal(ks[3], (planes, planes, 3, 3), jnp.float32),
        'g2':  0.5 + jax.random.uniform(ks[4], (planes,), jnp.float32),
        'be2': 0.1 * jax.random.normal(ks[5], (planes,), jnp.float32),
        'ws':  0.1 * jax.random.normal(ks[6], (planes, in_planes, 1, 1), jnp.float32),
        'gs':  0.5 + jax.random.uniform(ks[7], (planes,), jnp.float32),
        'bes': 0.1 * jax.random.normal(ks[8], (planes,), jnp.float32),
    }
    x = jax.random.normal(ks[9], (N, in_planes, H, W), jnp.float32)

    ref = jax.block_until_ready(ref_forward(x, params, stride))

    # 1) exact-semantics check: float32 end to end inside the Pallas path.
    fwd_f32 = jax.jit(functools.partial(basic_block_forward, stride=stride,
                                        compute_dtype=jnp.float32))
    out_f32 = jax.block_until_ready(fwd_f32(x, params))
    assert out_f32.shape == (N, planes, H // stride, W // stride), out_f32.shape
    np.testing.assert_allclose(np.asarray(out_f32), np.asarray(ref),
                               rtol=1e-3, atol=1e-3)

    # 2) performance path: bf16 MXU inputs with f32 accumulation (looser tolerance
    #    purely reflects bf16 input rounding; structure is identical to the f32 path).
    fwd_bf16 = jax.jit(functools.partial(basic_block_forward, stride=stride,
                                         compute_dtype=jnp.bfloat16))
    out_bf16 = jax.block_until_ready(fwd_bf16(x, params))
    np.testing.assert_allclose(np.asarray(out_bf16), np.asarray(ref),
                               rtol=5e-2, atol=5e-2)

    print("KERNEL_OK")
</pallas_src>

<mosaic_0001>
module attributes {stable_mosaic.version = 11 : i64} {
  func.func @_mm_stats_kernel(%arg0: i32, %arg1: memref<8x576xf32, #tpu.memory_space<vmem>>, %arg2: memref<576x128xf32, #tpu.memory_space<vmem>>, %arg3: memref<8x128xf32, #tpu.memory_space<vmem>>, %arg4: memref<8x128xf32, #tpu.memory_space<vmem>>) attributes {dimension_semantics = [#tpu.dimension_semantics<parallel>], iteration_bounds = array<i64: 1>, scalar_prefetch = 0 : i64, scratch_operands = 0 : i64, tpu.core_type = #tpu.core_type<tc>, window_params = [{transform_indices = @transform_0, window_bounds = array<i64: 8, 576>}, {pipeline_mode = #tpu.pipeline_mode<synchronous>, transform_indices = @transform_1, window_bounds = array<i64: 576, 128>}, {transform_indices = @transform_2, window_bounds = array<i64: 8, 128>}, {transform_indices = @transform_3, window_bounds = array<i64: 8, 128>}]} {
    %c0 = arith.constant 0 : index
    %c0_0 = arith.constant 0 : index
    %0 = vector.load %arg1[%c0, %c0_0] : memref<8x576xf32, #tpu.memory_space<vmem>>, vector<8x576xf32>
    %c0_1 = arith.constant 0 : index
    %c0_2 = arith.constant 0 : index
    %1 = vector.load %arg2[%c0_1, %c0_2] : memref<576x128xf32, #tpu.memory_space<vmem>>, vector<576x128xf32>
    %cst = arith.constant dense<0.000000e+00> : vector<8x128xf32>
    %2 = tpu.matmul %0, %1, %cst {dimension_numbers = #tpu.dot_dimension_numbers<[1], [0], [0], [1], [0, 0, 1, 1], [], []>} : vector<8x576xf32>, vector<576x128xf32>, vector<8x128xf32> -> vector<8x128xf32>
    %c0_3 = arith.constant 0 : index
    %c0_4 = arith.constant 0 : index
    %3 = vector.load %arg3[%c0_3, %c0_4] : memref<8x128xf32, #tpu.memory_space<vmem>>, vector<8x128xf32>
    tpu.vector_store %arg3[%c0_3, %c0_4], %2 {strides = array<i32>} : memref<8x128xf32, #tpu.memory_space<vmem>>, vector<8x128xf32>,
    %cst_5 = arith.constant dense<0.000000e+00> : vector<128xf32>
    %4 = vector.multi_reduction <add>, %2, %cst_5 [0] : vector<8x128xf32> to vector<128xf32>
    %5 = vector.shape_cast %4 : vector<128xf32> to vector<1x128xf32>
    %6 = arith.mulf %2, %2 : vector<8x128xf32>
    %cst_6 = arith.constant dense<0.000000e+00> : vector<128xf32>
    %7 = vector.multi_reduction <add>, %6, %cst_6 [0] : vector<8x128xf32> to vector<128xf32>
    %8 = vector.shape_cast %7 : vector<128xf32> to vector<1x128xf32>
    %cst_7 = arith.constant 0.000000e+00 : f32
    %9 = vector.broadcast %cst_7 : f32 to vector<1x128xf32>
    %10 = tpu.concatenate %5, %8, %9, %9, %9, %9, %9, %9 in 0 : vector<1x128xf32>, vector<1x128xf32>, vector<1x128xf32>, vector<1x128xf32>, vector<1x128xf32>, vector<1x128xf32>, vector<1x128xf32>, vector<1x128xf32> -> vector<8x128xf32>
    %c0_8 = arith.constant 0 : index
    %c0_9 = arith.constant 0 : index
    %11 = vector.load %arg4[%c0_8, %c0_9] : memref<8x128xf32, #tpu.memory_space<vmem>>, vector<8x128xf32>
    tpu.vector_store %arg4[%c0_8, %c0_9], %10 {strides = array<i32>} : memref<8x128xf32, #tpu.memory_space<vmem>>, vector<8x128xf32>,
    return
  }
  func.func @transform_0(%arg0: i32) -> (i32, i32) {
    %c0_i32 = arith.constant 0 : i32
    %c0_i32_0 = arith.constant 0 : i32
    return %arg0, %c0_i32 : i32, i32
  }
  func.func @transform_1(%arg0: i32) -> (i32, i32) {
    %c0_i32 = arith.constant 0 : i32
    %c0_i32_0 = arith.constant 0 : i32
    %c0_i32_1 = arith.constant 0 : i32
    return %c0_i32, %c0_i32_0 : i32, i32
  }
  func.func @transform_2(%arg0: i32) -> (i32, i32) {
    %c0_i32 = arith.constant 0 : i32
    %c0_i32_0 = arith.constant 0 : i32
    return %arg0, %c0_i32 : i32, i32
  }
  func.func @transform_3(%arg0: i32) -> (i32, i32) {
    %c0_i32 = arith.constant 0 : i32
    %c0_i32_0 = arith.constant 0 : i32
    return %arg0, %c0_i32 : i32, i32
  }
}

module attributes {stable_mosaic.version = 11 : i64} {
  func.func @_bn_relu_kernel(%arg0: i32, %arg1: memref<8x128xf32, #tpu.memory_space<vmem>>, %arg2: memref<1x128xf32, #tpu.memory_space<vmem>>, %arg3: memref<1x128xf32, #tpu.memory_space<vmem>>, %arg4: memref<8x128xf32, #tpu.memory_space<vmem>>) attributes {dimension_semantics = [#tpu.dimension_semantics<parallel>], iteration_bounds = array<i64: 1>, scalar_prefetch = 0 : i64, scratch_operands = 0 : i64, tpu.core_type = #tpu.core_type<tc>, window_params = [{transform_indices = @transform_0, window_bounds = array<i64: 8, 128>}, {pipeline_mode = #tpu.pipeline_mode<synchronous>, transform_indices = @transform_1, window_bounds = array<i64: 1, 128>}, {pipeline_mode = #tpu.pipeline_mode<synchronous>, transform_indices = @transform_2, window_bounds = array<i64: 1, 128>}, {transform_indices = @transform_3, window_bounds = array<i64: 8, 128>}]} {
    %c0 = arith.constant 0 : index
    %c0_0 = arith.constant 0 : index
    %0 = vector.load %arg1[%c0, %c0_0] : memref<8x128xf32, #tpu.memory_space<vmem>>, vector<8x128xf32>
    %c0_1 = arith.constant 0 : index
    %c0_2 = arith.constant 0 : index
    %1 = vector.load %arg2[%c0_1, %c0_2] : memref<1x128xf32, #tpu.memory_space<vmem>>, vector<1x128xf32>
    %2 = vector.broadcast %1 : vector<1x128xf32> to vector<8x128xf32>
    %3 = arith.mulf %0, %2 : vector<8x128xf32>
    %c0_3 = arith.constant 0 : index
    %c0_4 = arith.constant 0 : index
    %4 = vector.load %arg3[%c0_3, %c0_4] : memref<1x128xf32, #tpu.memory_space<vmem>>, vector<1x128xf32>
    %5 = vector.broadcast %4 : vector<1x128xf32> to vector<8x128xf32>
    %6 = arith.addf %3, %5 : vector<8x128xf32>
    %cst = arith.constant 0.000000e+00 : f32
    %7 = vector.broadcast %cst : f32 to vector<8x128xf32>
    %8 = arith.maximumf %6, %7 : vector<8x128xf32>
    %c0_5 = arith.constant 0 : index
    %c0_6 = arith.constant 0 : index
    %9 = vector.load %arg4[%c0_5, %c0_6] : memref<8x128xf32, #tpu.memory_space<vmem>>, vector<8x128xf32>
    tpu.vector_store %arg4[%c0_5, %c0_6], %8 {strides = array<i32>} : memref<8x128xf32, #tpu.memory_space<vmem>>, vector<8x128xf32>,
    return
  }
  func.func @transform_0(%arg0: i32) -> (i32, i32) {
    %c0_i32 = arith.constant 0 : i32
    %c0_i32_0 = arith.constant 0 : i32
    return %arg0, %c0_i32 : i32, i32
  }
  func.func @transform_1(%arg0: i32) -> (i32, i32) {
    %c0_i32 = arith.constant 0 : i32
    %c0_i32_0 = arith.constant 0 : i32
    %c0_i32_1 = arith.constant 0 : i32
    return %c0_i32, %c0_i32_0 : i32, i32
  }
  func.func @transform_2(%arg0: i32) -> (i32, i32) {
    %c0_i32 = arith.constant 0 : i32
    %c0_i32_0 = arith.constant 0 : i32
    %c0_i32_1 = arith.constant 0 : i32
    return %c0_i32, %c0_i32_0 : i32, i32
  }
  func.func @transform_3(%arg0: i32) -> (i32, i32) {
    %c0_i32 = arith.constant 0 : i32
    %c0_i32_0 = arith.constant 0 : i32
    return %arg0, %c0_i32 : i32, i32
  }
}

module attributes {stable_mosaic.version = 11 : i64} {
  func.func @_mm_stats_sc_kernel(%arg0: i32, %arg1: memref<8x1152xf32, #tpu.memory_space<vmem>>, %arg2: memref<1152x128xf32, #tpu.memory_space<vmem>>, %arg3: memref<8x64xf32, #tpu.memory_space<vmem>>, %arg4: memref<64x128xf32, #tpu.memory_space<vmem>>, %arg5: memref<8x128xf32, #tpu.memory_space<vmem>>, %arg6: memref<8x128xf32, #tpu.memory_space<vmem>>) attributes {dimension_semantics = [#tpu.dimension_semantics<parallel>], iteration_bounds = array<i64: 1>, scalar_prefetch = 0 : i64, scratch_operands = 0 : i64, tpu.core_type = #tpu.core_type<tc>, window_params = [{transform_indices = @transform_0, window_bounds = array<i64: 8, 1152>}, {pipeline_mode = #tpu.pipeline_mode<synchronous>, transform_indices = @transform_1, window_bounds = array<i64: 1152, 128>}, {transform_indices = @transform_2, window_bounds = array<i64: 8, 64>}, {pipeline_mode = #tpu.pipeline_mode<synchronous>, transform_indices = @transform_3, window_bounds = array<i64: 64, 128>}, {transform_indices = @transform_4, window_bounds = array<i64: 8, 128>}, {transform_indices = @transform_5, window_bounds = array<i64: 8, 128>}]} {
    %c0 = arith.constant 0 : index
    %c0_0 = arith.constant 0 : index
    %0 = vector.load %arg1[%c0, %c0_0] : memref<8x1152xf32, #tpu.memory_space<vmem>>, vector<8x1152xf32>
    %c0_1 = arith.constant 0 : index
    %c0_2 = arith.constant 0 : index
    %1 = vector.load %arg2[%c0_1, %c0_2] : memref<1152x128xf32, #tpu.memory_space<vmem>>, vector<1152x128xf32>
    %cst = arith.constant dense<0.000000e+00> : vector<8x128xf32>
    %2 = tpu.matmul %0, %1, %cst {dimension_numbers = #tpu.dot_dimension_numbers<[1], [0], [0], [1], [0, 0, 1, 1], [], []>} : vector<8x1152xf32>, vector<1152x128xf32>, vector<8x128xf32> -> vector<8x128xf32>
    %c0_3 = arith.constant 0 : index
    %c0_4 = arith.constant 0 : index
    %3 = vector.load %arg3[%c0_3, %c0_4] : memref<8x64xf32, #tpu.memory_space<vmem>>, vector<8x64xf32>
    %c0_5 = arith.constant 0 : index
    %c0_6 = arith.constant 0 : index
    %4 = vector.load %arg4[%c0_5, %c0_6] : memref<64x128xf32, #tpu.memory_space<vmem>>, vector<64x128xf32>
    %cst_7 = arith.constant dense<0.000000e+00> : vector<8x128xf32>
    %5 = tpu.matmul %3, %4, %cst_7 {dimension_numbers = #tpu.dot_dimension_numbers<[1], [0], [0], [1], [0, 0, 1, 1], [], []>} : vector<8x64xf32>, vector<64x128xf32>, vector<8x128xf32> -> vector<8x128xf32>
    %c0_8 = arith.constant 0 : index
    %c0_9 = arith.constant 0 : index
    %6 = vector.load %arg5[%c0_8, %c0_9] : memref<8x128xf32, #tpu.memory_space<vmem>>, vector<8x128xf32>
    tpu.vector_store %arg5[%c0_8, %c0_9], %2 {strides = array<i32>} : memref<8x128xf32, #tpu.memory_space<vmem>>, vector<8x128xf32>,
    %cst_10 = arith.constant dense<0.000000e+00> : vector<128xf32>
    %7 = vector.multi_reduction <add>, %2, %cst_10 [0] : vector<8x128xf32> to vector<128xf32>
    %8 = vector.shape_cast %7 : vector<128xf32> to vector<1x128xf32>
    %9 = arith.mulf %2, %2 : vector<8x128xf32>
    %cst_11 = arith.constant dense<0.000000e+00> : vector<128xf32>
    %10 = vector.multi_reduction <add>, %9, %cst_11 [0] : vector<8x128xf32> to vector<128xf32>
    %11 = vector.shape_cast %10 : vector<128xf32> to vector<1x128xf32>
    %cst_12 = arith.constant dense<0.000000e+00> : vector<128xf32>
    %12 = vector.multi_reduction <add>, %5, %cst_12 [0] : vector<8x128xf32> to vector<128xf32>
    %13 = vector.shape_cast %12 : vector<128xf32> to vector<1x128xf32>
    %14 = arith.mulf %5, %5 : vector<8x128xf32>
    %cst_13 = arith.constant dense<0.000000e+00> : vector<128xf32>
    %15 = vector.multi_reduction <add>, %14, %cst_13 [0] : vector<8x128xf32> to vector<128xf32>
    %16 = vector.shape_cast %15 : vector<128xf32> to vector<1x128xf32>
    %cst_14 = arith.constant 0.000000e+00 : f32
    %17 = vector.broadcast %cst_14 : f32 to vector<1x128xf32>
    %18 = tpu.concatenate %8, %11, %13, %16, %17, %17, %17, %17 in 0 : vector<1x128xf32>, vector<1x128xf32>, vector<1x128xf32>, vector<1x128xf32>, vector<1x128xf32>, vector<1x128xf32>, vector<1x128xf32>, vector<1x128xf32> -> vector<8x128xf32>
    %c0_15 = arith.constant 0 : index
    %c0_16 = arith.constant 0 : index
    %19 = vector.load %arg6[%c0_15, %c0_16] : memref<8x128xf32, #tpu.memory_space<vmem>>, vector<8x128xf32>
    tpu.vector_store %arg6[%c0_15, %c0_16], %18 {strides = array<i32>} : memref<8x128xf32, #tpu.memory_space<vmem>>, vector<8x128xf32>,
    return
  }
  func.func @transform_0(%arg0: i32) -> (i32, i32) {
    %c0_i32 = arith.constant 0 : i32
    %c0_i32_0 = arith.constant 0 : i32
    return %arg0, %c0_i32 : i32, i32
  }
  func.func @transform_1(%arg0: i32) -> (i32, i32) {
    %c0_i32 = arith.constant 0 : i32
    %c0_i32_0 = arith.constant 0 : i32
    %c0_i32_1 = arith.constant 0 : i32
    return %c0_i32, %c0_i32_0 : i32, i32
  }
  func.func @transform_2(%arg0: i32) -> (i32, i32) {
    %c0_i32 = arith.constant 0 : i32
    %c0_i32_0 = arith.constant 0 : i32
    return %arg0, %c0_i32 : i32, i32
  }
  func.func @transform_3(%arg0: i32) -> (i32, i32) {
    %c0_i32 = arith.constant 0 : i32
    %c0_i32_0 = arith.constant 0 : i32
    %c0_i32_1 = arith.constant 0 : i32
    return %c0_i32, %c0_i32_0 : i32, i32
  }
  func.func @transform_4(%arg0: i32) -> (i32, i32) {
    %c0_i32 = arith.constant 0 : i32
    %c0_i32_0 = arith.constant 0 : i32
    return %arg0, %c0_i32 : i32, i32
  }
  func.func @transform_5(%arg0: i32) -> (i32, i32) {
    %c0_i32 = arith.constant 0 : i32
    %c0_i32_0 = arith.constant 0 : i32
    return %arg0, %c0_i32 : i32, i32
  }
}

module attributes {stable_mosaic.version = 11 : i64} {
  func.func @_bn_add_sc_relu_kernel(%arg0: i32, %arg1: memref<8x128xf32, #tpu.memory_space<vmem>>, %arg2: memref<8x64xf32, #tpu.memory_space<vmem>>, %arg3: memref<64x128xf32, #tpu.memory_space<vmem>>, %arg4: memref<1x128xf32, #tpu.memory_space<vmem>>, %arg5: memref<1x128xf32, #tpu.memory_space<vmem>>, %arg6: memref<1x128xf32, #tpu.memory_space<vmem>>, %arg7: memref<1x128xf32, #tpu.memory_space<vmem>>, %arg8: memref<8x128xf32, #tpu.memory_space<vmem>>) attributes {dimension_semantics = [#tpu.dimension_semantics<parallel>], iteration_bounds = array<i64: 1>, scalar_prefetch = 0 : i64, scratch_operands = 0 : i64, tpu.core_type = #tpu.core_type<tc>, window_params = [{transform_indices = @transform_0, window_bounds = array<i64: 8, 128>}, {transform_indices = @transform_1, window_bounds = array<i64: 8, 64>}, {pipeline_mode = #tpu.pipeline_mode<synchronous>, transform_indices = @transform_2, window_bounds = array<i64: 64, 128>}, {pipeline_mode = #tpu.pipeline_mode<synchronous>, transform_indices = @transform_3, window_bounds = array<i64: 1, 128>}, {pipeline_mode = #tpu.pipeline_mode<synchronous>, transform_indices = @transform_4, window_bounds = array<i64: 1, 128>}, {pipeline_mode = #tpu.pipeline_mode<synchronous>, transform_indices = @transform_5, window_bounds = array<i64: 1, 128>}, {pipeline_mode = #tpu.pipeline_mode<synchronous>, transform_indices = @transform_6, window_bounds = array<i64: 1, 128>}, {transform_indices = @transform_7, window_bounds = array<i64: 8, 128>}]} {
    %c0 = arith.constant 0 : index
    %c0_0 = arith.constant 0 : index
    %0 = vector.load %arg1[%c0, %c0_0] : memref<8x128xf32, #tpu.memory_space<vmem>>, vector<8x128xf32>
    %c0_1 = arith.constant 0 : index
    %c0_2 = arith.constant 0 : index
    %1 = vector.load %arg4[%c0_1, %c0_2] : memref<1x128xf32, #tpu.memory_space<vmem>>, vector<1x128xf32>
    %2 = vector.broadcast %1 : vector<1x128xf32> to vector<8x128xf32>
    %3 = arith.mulf %0, %2 : vector<8x128xf32>
    %c0_3 = arith.constant 0 : index
    %c0_4 = arith.constant 0 : index
    %4 = vector.load %arg5[%c0_3, %c0_4] : memref<1x128xf32, #tpu.memory_space<vmem>>, vector<1x128xf32>
    %5 = vector.broadcast %4 : vector<1x128xf32> to vector<8x128xf32>
    %6 = arith.addf %3, %5 : vector<8x128xf32>
    %c0_5 = arith.constant 0 : index
    %c0_6 = arith.constant 0 : index
    %7 = vector.load %arg2[%c0_5, %c0_6] : memref<8x64xf32, #tpu.memory_space<vmem>>, vector<8x64xf32>
    %c0_7 = arith.constant 0 : index
    %c0_8 = arith.constant 0 : index
    %8 = vector.load %arg3[%c0_7, %c0_8] : memref<64x128xf32, #tpu.memory_space<vmem>>, vector<64x128xf32>
    %cst = arith.constant dense<0.000000e+00> : vector<8x128xf32>
    %9 = tpu.matmul %7, %8, %cst {dimension_numbers = #tpu.dot_dimension_numbers<[1], [0], [0], [1], [0, 0, 1, 1], [], []>} : vector<8x64xf32>, vector<64x128xf32>, vector<8x128xf32> -> vector<8x128xf32>
    %c0_9 = arith.constant 0 : index
    %c0_10 = arith.constant 0 : index
    %10 = vector.load %arg6[%c0_9, %c0_10] : memref<1x128xf32, #tpu.memory_space<vmem>>, vector<1x128xf32>
    %11 = vector.broadcast %10 : vector<1x128xf32> to vector<8x128xf32>
    %12 = arith.mulf %9, %11 : vector<8x128xf32>
    %13 = arith.addf %6, %12 : vector<8x128xf32>
    %c0_11 = arith.constant 0 : index
    %c0_12 = arith.constant 0 : index
    %14 = vector.load %arg7[%c0_11, %c0_12] : memref<1x128xf32, #tpu.memory_space<vmem>>, vector<1x128xf32>
    %15 = vector.broadcast %14 : vector<1x128xf32> to vector<8x128xf32>
    %16 = arith.addf %13, %15 : vector<8x128xf32>
    %cst_13 = arith.constant 0.000000e+00 : f32
    %17 = vector.broadcast %cst_13 : f32 to vector<8x128xf32>
    %18 = arith.maximumf %16, %17 : vector<8x128xf32>
    %c0_14 = arith.constant 0 : index
    %c0_15 = arith.constant 0 : index
    %19 = vector.load %arg8[%c0_14, %c0_15] : memref<8x128xf32, #tpu.memory_space<vmem>>, vector<8x128xf32>
    tpu.vector_store %arg8[%c0_14, %c0_15], %18 {strides = array<i32>} : memref<8x128xf32, #tpu.memory_space<vmem>>, vector<8x128xf32>,
    return
  }
  func.func @transform_0(%arg0: i32) -> (i32, i32) {
    %c0_i32 = arith.constant 0 : i32
    %c0_i32_0 = arith.constant 0 : i32
    return %arg0, %c0_i32 : i32, i32
  }
  func.func @transform_1(%arg0: i32) -> (i32, i32) {
    %c0_i32 = arith.constant 0 : i32
    %c0_i32_0 = arith.constant 0 : i32
    return %arg0, %c0_i32 : i32, i32
  }
  func.func @transform_2(%arg0: i32) -> (i32, i32) {
    %c0_i32 = arith.constant 0 : i32
    %c0_i32_0 = arith.constant 0 : i32
    %c0_i32_1 = arith.constant 0 : i32
    return %c0_i32, %c0_i32_0 : i32, i32
  }
  func.func @transform_3(%arg0: i32) -> (i32, i32) {
    %c0_i32 = arith.constant 0 : i32
    %c0_i32_0 = arith.constant 0 : i32
    %c0_i32_1 = arith.constant 0 : i32
    return %c0_i32, %c0_i32_0 : i32, i32
  }
  func.func @transform_4(%arg0: i32) -> (i32, i32) {
    %c0_i32 = arith.constant 0 : i32
    %c0_i32_0 = arith.constant 0 : i32
    %c0_i32_1 = arith.constant 0 : i32
    return %c0_i32, %c0_i32_0 : i32, i32
  }
  func.func @transform_5(%arg0: i32) -> (i32, i32) {
    %c0_i32 = arith.constant 0 : i32
    %c0_i32_0 = arith.constant 0 : i32
    %c0_i32_1 = arith.constant 0 : i32
    return %c0_i32, %c0_i32_0 : i32, i32
  }
  func.func @transform_6(%arg0: i32) -> (i32, i32) {
    %c0_i32 = arith.constant 0 : i32
    %c0_i32_0 = arith.constant 0 : i32
    %c0_i32_1 = arith.constant 0 : i32
    return %c0_i32, %c0_i32_0 : i32, i32
  }
  func.func @transform_7(%arg0: i32) -> (i32, i32) {
    %c0_i32 = arith.constant 0 : i32
    %c0_i32_0 = arith.constant 0 : i32
    return %arg0, %c0_i32 : i32, i32
  }
}

</mosaic_0001>

<llo_original>
// kernel: mul.4
$region0: #{mul.4}
  %s0 = inlined_call_operand.vmem [shape: f32[3,3,4,8], index: 0, kind: input, shape index: {}]
  %s1 = inlined_call_operand.vmem [shape: f32[36,8], index: 1, kind: output, shape index: {}]
  $region1: #{mul.4} parent=0
    #allocation0 [shape = 'u8[36864]{0}', space=vmem, size = 0x9000, scoped, tag = 'scoped mem for input reshape']
    %s3 = sshll.u32 1, 4
    %s4 = ssub.s32 %s3, 1
    %s5 = smul.addr 4, 8
    %s6 = scalar_lea.vmem %s0, %s5
    %v7 = vld [vmem:[%s6] sm:%s4]
    %s8 = scalar_lea.vmem [#allocation0], 64
    %9 = vst [vmem:[%s8] sm:%s4] %v7
    %s10 = smul.addr 4, 7
    %s11 = scalar_lea.vmem %s0, %s10
    %v12 = vld [vmem:[%s11] sm:%s4]
    %s13 = scalar_lea.vmem [#allocation0], 56
    %14 = vst [vmem:[%s13] sm:%s4] %v12
    %s15 = smul.addr 4, 6
    %s16 = scalar_lea.vmem %s0, %s15
    %v17 = vld [vmem:[%s16] sm:%s4]
    %s18 = scalar_lea.vmem [#allocation0], 48
    %19 = vst [vmem:[%s18] sm:%s4] %v17
    %s20 = smul.addr 4, 5
    %s21 = scalar_lea.vmem %s0, %s20
    %v22 = vld [vmem:[%s21] sm:%s4]
    %s23 = scalar_lea.vmem [#allocation0], 40
    %24 = vst [vmem:[%s23] sm:%s4] %v22
    %s25 = smul.addr 4, 4
    %s26 = scalar_lea.vmem %s0, %s25
    %v27 = vld [vmem:[%s26] sm:%s4]
    %s28 = scalar_lea.vmem [#allocation0], 32
    %29 = vst [vmem:[%s28] sm:%s4] %v27
    %s30 = smul.addr 4, 3
    %s31 = scalar_lea.vmem %s0, %s30
    %v32 = vld [vmem:[%s31] sm:%s4]
    %s33 = scalar_lea.vmem [#allocation0], 24
    %34 = vst [vmem:[%s33] sm:%s4] %v32
    %s35 = smul.addr 4, 2
    %s36 = scalar_lea.vmem %s0, %s35
    %v37 = vld [vmem:[%s36] sm:%s4]
    %s38 = scalar_lea.vmem [#allocation0], 16
    %39 = vst [vmem:[%s38] sm:%s4] %v37
    %s40 = scalar_lea.vmem %s0, 4
    %v41 = vld [vmem:[%s40] sm:%s4]
    %s42 = scalar_lea.vmem [#allocation0], 8
    %43 = vst [vmem:[%s42] sm:%s4] %v41
    %v44 = vld [vmem:[%s0] sm:%s4]
    %45 = vst [vmem:[#allocation0] sm:%s4] %v44
    %v46 = vld [vmem:[#allocation0] sm:$0xf]
    %vm47 = vcmask 64512
    %48 = vst.msk [vmem:[%s1] sm:$0xf] %vm47, %v46
    %s49 = scalar_lea.vmem [#allocation0], 8
    %v50 = vld [vmem:[%s49] sm:$0xf]
    %vm51 = vcmask 64512
    %s52 = scalar_lea.vmem %s1, 4
    %53 = vst.msk [vmem:[%s52] sm:$0xf] %vm51, %v50
    %s54 = scalar_lea.vmem [#allocation0], 16
    %v55 = vld [vmem:[%s54] sm:$0xf]
    %vm56 = vcmask 64512
    %s57 = scalar_lea.vmem %s1, 8
    %58 = vst.msk [vmem:[%s57] sm:$0xf] %vm56, %v55
    %s59 = scalar_lea.vmem [#allocation0], 24
    %v60 = vld [vmem:[%s59] sm:$0xf]
    %vm61 = vcmask 64512
    %s62 = scalar_lea.vmem %s1, 12
    %63 = vst.msk [vmem:[%s62] sm:$0xf] %vm61, %v60
    %s64 = scalar_lea.vmem [#allocation0], 32
    %v65 = vld [vmem:[%s64] sm:$0xf]
    %vm66 = vcmask 64512
    %s67 = scalar_lea.vmem %s1, 16
    %68 = vst.msk [vmem:[%s67] sm:$0xf] %vm66, %v65
    %s69 = scalar_lea.vmem [#allocation0], 40
    %v70 = vld [vmem:[%s69] sm:$0xf]
    %vm71 = vcmask 64512
    %s72 = scalar_lea.vmem %s1, 20
    %73 = vst.msk [vmem:[%s72] sm:$0xf] %vm71, %v70
    %s74 = scalar_lea.vmem [#allocation0], 48
    %v75 = vld [vmem:[%s74] sm:$0xf]
    %vm76 = vcmask 64512
    %s77 = scalar_lea.vmem %s1, 24
    %78 = vst.msk [vmem:[%s77] sm:$0xf] %vm76, %v75
    %s79 = scalar_lea.vmem [#allocation0], 56
    %v80 = vld [vmem:[%s79] sm:$0xf]
    %vm81 = vcmask 64512
    %s82 = scalar_lea.vmem %s1, 28
    %83 = vst.msk [vmem:[%s82] sm:$0xf] %vm81, %v80
    %s84 = scalar_lea.vmem [#allocation0], 64
    %v85 = vld [vmem:[%s84] sm:$0xf]
    %vm86 = vcmask 64512
    %s87 = scalar_lea.vmem %s1, 32
    %88 = vst.msk [vmem:[%s87] sm:$0xf] %vm86, %v85

// kernel: squeeze.7
$region0: #{squeeze.7}
  %s0 = inlined_call_operand.vmem [shape: f32[128], index: 0, kind: input, shape index: {}]
  %s1 = inlined_call_operand.vmem [shape: f32[16,8], index: 1, kind: output, shape index: {}]
  $region1: #{squeeze.7} parent=0
    #allocation0 [shape = 'u8[4096]{0}', space=vmem, size = 0x1000, scoped, tag = 'scoped mem for input reshape']
    %s3 = sshll.u32 1, 1
    %s4 = ssub.s32 %s3, 1
    %v5 = vld [vmem:[%s0] sm:%s4]
    %6 = vst [vmem:[#allocation0] sm:%s4] %v5
    %v7 = vld [vmem:[#allocation0] sm:$0x1]
    %vm8 = vcmask 64512
    %9 = vst.msk [vmem:[%s1] sm:$0x1] %vm8, %v7
    %v10 = vld [vmem:[#allocation0] sm:$0x1]
    %11 = vrot.lane.b32.xlu0 %v10, 120
    %v12 = vpop.permute.xlu0 %11
    %vm13 = vcmask 64512
    %s14 = scalar_lea.vmem %s1, 1
    %15 = vst.msk [vmem:[%s14] sm:$0x1] %vm13, %v12
    %v16 = vld [vmem:[#allocation0] sm:$0x1]
    %17 = vrot.lane.b32.xlu0 %v16, 112
    %v18 = vpop.permute.xlu0 %17
    %vm19 = vcmask 64512
    %s20 = scalar_lea.vmem %s1, 2
    %21 = vst.msk [vmem:[%s20] sm:$0x1] %vm19, %v18
    %v22 = vld [vmem:[#allocation0] sm:$0x1]
    %23 = vrot.lane.b32.xlu0 %v22, 104
    %v24 = vpop.permute.xlu0 %23
    %vm25 = vcmask 64512
    %s26 = scalar_lea.vmem %s1, 3
    %27 = vst.msk [vmem:[%s26] sm:$0x1] %vm25, %v24
    %v28 = vld [vmem:[#allocation0] sm:$0x1]
    %29 = vrot.lane.b32.xlu0 %v28, 96
    %v30 = vpop.permute.xlu0 %29
    %vm31 = vcmask 64512
    %s32 = scalar_lea.vmem %s1, 4
    %33 = vst.msk [vmem:[%s32] sm:$0x1] %vm31, %v30
    %v34 = vld [vmem:[#allocation0] sm:$0x1]
    %35 = vrot.lane.b32.xlu0 %v34, 88
    %v36 = vpop.permute.xlu0 %35
    %vm37 = vcmask 64512
    %s38 = scalar_lea.vmem %s1, 5
    %39 = vst.msk [vmem:[%s38] sm:$0x1] %vm37, %v36
    %v40 = vld [vmem:[#allocation0] sm:$0x1]
    %41 = vrot.lane.b32.xlu0 %v40, 80
    %v42 = vpop.permute.xlu0 %41
    %vm43 = vcmask 64512
    %s44 = scalar_lea.vmem %s1, 6
    %45 = vst.msk [vmem:[%s44] sm:$0x1] %vm43, %v42
    %v46 = vld [vmem:[#allocation0] sm:$0x1]
    %47 = vrot.lane.b32.xlu0 %v46, 72
    %v48 = vpop.permute.xlu0 %47
    %vm49 = vcmask 64512
    %s50 = scalar_lea.vmem %s1, 7
    %51 = vst.msk [vmem:[%s50] sm:$0x1] %vm49, %v48
    %v52 = vld [vmem:[#allocation0] sm:$0x1]
    %53 = vrot.lane.b32.xlu0 %v52, 64
    %v54 = vpop.permute.xlu0 %53
    %vm55 = vcmask 64512
    %s56 = scalar_lea.vmem %s1, 8
    %57 = vst.msk [vmem:[%s56] sm:$0x1] %vm55, %v54
    %v58 = vld [vmem:[#allocation0] sm:$0x1]
    %59 = vrot.lane.b32.xlu0 %v58, 56
    %v60 = vpop.permute.xlu0 %59
    %vm61 = vcmask 64512
    %s62 = scalar_lea.vmem %s1, 9
    %63 = vst.msk [vmem:[%s62] sm:$0x1] %vm61, %v60
    %v64 = vld [vmem:[#allocation0] sm:$0x1]
    %65 = vrot.lane.b32.xlu0 %v64, 48
    %v66 = vpop.permute.xlu0 %65
    %vm67 = vcmask 64512
    %s68 = scalar_lea.vmem %s1, 10
    %69 = vst.msk [vmem:[%s68] sm:$0x1] %vm67, %v66
    %v70 = vld [vmem:[#allocation0] sm:$0x1]
    %71 = vrot.lane.b32.xlu0 %v70, 40
    %v72 = vpop.permute.xlu0 %71
    %vm73 = vcmask 64512
    %s74 = scalar_lea.vmem %s1, 11
    %75 = vst.msk [vmem:[%s74] sm:$0x1] %vm73, %v72
    %v76 = vld [vmem:[#allocation0] sm:$0x1]
    %77 = vrot.lane.b32.xlu0 %v76, 32
    %v78 = vpop.permute.xlu0 %77
    %vm79 = vcmask 64512
    %s80 = scalar_lea.vmem %s1, 12
    %81 = vst.msk [vmem:[%s80] sm:$0x1] %vm79, %v78
    %v82 = vld [vmem:[#allocation0] sm:$0x1]
    %83 = vrot.lane.b32.xlu0 %v82, 24
    %v84 = vpop.permute.xlu0 %83
    %vm85 = vcmask 64512
    %s86 = scalar_lea.vmem %s1, 13
    %87 = vst.msk [vmem:[%s86] sm:$0x1] %vm85, %v84
    %v88 = vld [vmem:[#allocation0] sm:$0x1]
    %89 = vrot.lane.b32.xlu0 %v88, 16
    %v90 = vpop.permute.xlu0 %89
    %vm91 = vcmask 64512
    %s92 = scalar_lea.vmem %s1, 14
    %93 = vst.msk [vmem:[%s92] sm:$0x1] %vm91, %v90
    %v94 = vld [vmem:[#allocation0] sm:$0x1]
    %95 = vrot.lane.b32.xlu0 %v94, 8
    %v96 = vpop.permute.xlu0 %95
    %vm97 = vcmask 64512
    %s98 = scalar_lea.vmem %s1, 15
    %99 = vst.msk [vmem:[%s98] sm:$0x1] %vm97, %v96

// kernel: tile.33
$region0: #{tile.33}
  #allocation0 [shape = 's32[1]{0}', space=sflag, size = 0x4, scoped, tag = 'scoped memory for tile.33']
  %s0 = inlined_call_operand.vmem [shape: f32[8], index: 0, kind: input, shape index: {}]
  %s1 = inlined_call_operand.vmem [shape: f32[16,8], index: 1, kind: output, shape index: {}]
  // Predicated region
  $region2: #{tile.33} parent=0 // pred_check
    _
  $region3: #{tile.33} parent=0 // pred_check_branch
    %3 = sbr.rel (0) target = $region5
  $region4: #{tile.33} parent=0 // pred_region
    _
  $region5: #{tile.33} parent=0 // pred_fallthru
    _
  %v4 = vld [vmem:[%s0] ss:$0 sm:$0xff]
  %5 = vst [vmem:[%s1] sm:$0xff] %v4
  %s6 = scalar_lea.vmem %s1, 8
  %7 = vst [vmem:[%s6] sm:$0xff] %v4

// kernel: tile.34
$region0: #{tile.34}
  %s0 = inlined_call_operand.vmem [shape: f32[16,8], index: 0, kind: input, shape index: {}]
  %s1 = inlined_call_operand.vmem [shape: f32[1,128], index: 1, kind: output, shape index: {}]
  $region1: #{tile.34} parent=0
    #allocation0 [shape = 'u8[4096]{0}', space=vmem, size = 0x1000, scoped, tag = 'scoped mem for output reshape']
    %v2 = vld [vmem:[%s0] sm:$0x1]
    %vm3 = vcmask 64512
    %4 = vst.msk [vmem:[#allocation0] sm:$0x1] %vm3, %v2
    %s5 = scalar_lea.vmem %s0, 15
    %v6 = vld [vmem:[%s5] sm:$0x1]
    %7 = vrot.lane.b32.xlu0 %v6, 120
    %v8 = vpop.permute.xlu0 %7
    %vm9 = vcmask 1048512
    %10 = vst.msk [vmem:[#allocation0] sm:$0x1] %vm9, %v8
    %s11 = scalar_lea.vmem %s0, 14
    %v12 = vld [vmem:[%s11] sm:$0x1]
    %13 = vrot.lane.b32.xlu0 %v12, 112
    %v14 = vpop.permute.xlu0 %13
    %vm15 = vcmask 982912
    %16 = vst.msk [vmem:[#allocation0] sm:$0x1] %vm15, %v14
    %s17 = scalar_lea.vmem %s0, 13
    %v18 = vld [vmem:[%s17] sm:$0x1]
    %19 = vrot.lane.b32.xlu0 %v18, 104
    %v20 = vpop.permute.xlu0 %19
    %vm21 = vcmask 917312
    %22 = vst.msk [vmem:[#allocation0] sm:$0x1] %vm21, %v20
    %s23 = scalar_lea.vmem %s0, 12
    %v24 = vld [vmem:[%s23] sm:$0x1]
    %25 = vrot.lane.b32.xlu0 %v24, 96
    %v26 = vpop.permute.xlu0 %25
    %vm27 = vcmask 851712
    %28 = vst.msk [vmem:[#allocation0] sm:$0x1] %vm27, %v26
    %s29 = scalar_lea.vmem %s0, 11
    %v30 = vld [vmem:[%s29] sm:$0x1]
    %31 = vrot.lane.b32.xlu0 %v30, 88
    %v32 = vpop.permute.xlu0 %31
    %vm33 = vcmask 786112
    %34 = vst.msk [vmem:[#allocation0] sm:$0x1] %vm33, %v32
    %s35 = scalar_lea.vmem %s0, 10
    %v36 = vld [vmem:[%s35] sm:$0x1]
    %37 = vrot.lane.b32.xlu0 %v36, 80
    %v38 = vpop.permute.xlu0 %37
    %vm39 = vcmask 720512
    %40 = vst.msk [vmem:[#allocation0] sm:$0x1] %vm39, %v38
    %s41 = scalar_lea.vmem %s0, 9
    %v42 = vld [vmem:[%s41] sm:$0x1]
    %43 = vrot.lane.b32.xlu0 %v42, 72
    %v44 = vpop.permute.xlu0 %43
    %vm45 = vcmask 654912
    %46 = vst.msk [vmem:[#allocation0] sm:$0x1] %vm45, %v44
    %s47 = scalar_lea.vmem %s0, 8
    %v48 = vld [vmem:[%s47] sm:$0x1]
    %49 = vrot.lane.b32.xlu0 %v48, 64
    %v50 = vpop.permute.xlu0 %49
    %vm51 = vcmask 589312
    %52 = vst.msk [vmem:[#allocation0] sm:$0x1] %vm51, %v50
    %s53 = scalar_lea.vmem %s0, 7
    %v54 = vld [vmem:[%s53] sm:$0x1]
    %55 = vrot.lane.b32.xlu0 %v54, 56
    %v56 = vpop.permute.xlu0 %55
    %vm57 = vcmask 523712
    %58 = vst.msk [vmem:[#allocation0] sm:$0x1] %vm57, %v56
    %s59 = scalar_lea.vmem %s0, 6
    %v60 = vld [vmem:[%s59] sm:$0x1]
    %61 = vrot.lane.b32.xlu0 %v60, 48
    %v62 = vpop.permute.xlu0 %61
    %vm63 = vcmask 458112
    %64 = vst.msk [vmem:[#allocation0] sm:$0x1] %vm63, %v62
    %s65 = scalar_lea.vmem %s0, 5
    %v66 = vld [vmem:[%s65] sm:$0x1]
    %67 = vrot.lane.b32.xlu0 %v66, 40
    %v68 = vpop.permute.xlu0 %67
    %vm69 = vcmask 392512
    %70 = vst.msk [vmem:[#allocation0] sm:$0x1] %vm69, %v68
    %s71 = scalar_lea.vmem %s0, 4
    %v72 = vld [vmem:[%s71] sm:$0x1]
    %73 = vrot.lane.b32.xlu0 %v72, 32
    %v74 = vpop.permute.xlu0 %73
    %vm75 = vcmask 326912
    %76 = vst.msk [vmem:[#allocation0] sm:$0x1] %vm75, %v74
    %s77 = scalar_lea.vmem %s0, 3
    %v78 = vld [vmem:[%s77] sm:$0x1]
    %79 = vrot.lane.b32.xlu0 %v78, 24
    %v80 = vpop.permute.xlu0 %79
    %vm81 = vcmask 261312
    %82 = vst.msk [vmem:[#allocation0] sm:$0x1] %vm81, %v80
    %s83 = scalar_lea.vmem %s0, 2
    %v84 = vld [vmem:[%s83] sm:$0x1]
    %85 = vrot.lane.b32.xlu0 %v84, 16
    %v86 = vpop.permute.xlu0 %85
    %vm87 = vcmask 195712
    %88 = vst.msk [vmem:[#allocation0] sm:$0x1] %vm87, %v86
    %s89 = scalar_lea.vmem %s0, 1
    %v90 = vld [vmem:[%s89] sm:$0x1]
    %91 = vrot.lane.b32.xlu0 %v90, 8
    %v92 = vpop.permute.xlu0 %91
    %vm93 = vcmask 130112
    %94 = vst.msk [vmem:[#allocation0] sm:$0x1] %vm93, %v92
    %s96 = sshll.u32 1, 1
    %s97 = ssub.s32 %s96, 1
    %v99 = vld [vmem:[#allocation0] sm:%s97]
    %s100 = sshll.u32 1, 1
    %s101 = ssub.s32 %s100, 1
    %102 = vst [vmem:[%s1] sm:%s101] %v99

// kernel: basic_block_forward.4
$region0: #{basic_block_forward.4}
  #allocation0 [shape = 'u32[]', space=smem, size = 0x4, offset = 0x4, fixed_abs, tag = 'smem constant byte address 0x4 - core index']
  #allocation1 [shape = 'u32[144,128]{1,0:T(1,128)}', space=vmem, size = 0x12000, scoped, tag = 'internal scratch']
  %s0 = inlined_call_operand.vmem [shape: f32[8,576], index: 0, kind: input, shape index: {}]
  %s1 = inlined_call_operand.vmem [shape: f32[576,128], index: 1, kind: input, shape index: {}]
  %s2 = inlined_call_operand.vmem [shape: f32[8,128], index: 2, kind: output, shape index: {0}]
  %s3 = inlined_call_operand.vmem [shape: f32[8,128], index: 3, kind: output, shape index: {1}]
  %4 = xla_tuple %s2, %s3
  %s5 = sld [smem:[#allocation0]]
  $region26: #{basic_block_forward.4} parent=0
    _
  %s7 = ssub.s32 1, %s5
  %s8 = scalar_select 0, %s7, %s5
  // Predicated region
  $region2: #{basic_block_forward.4} parent=0 // pred_check
    _
  $region3: #{basic_block_forward.4} parent=0 // pred_check_branch
    %10 = sbr.rel (0) target = $region5
  $region4: #{basic_block_forward.4} parent=0 // pred_region
    _
  $region5: #{basic_block_forward.4} parent=0 // pred_fallthru
    _
  // Predicated region
  $region6: #{basic_block_forward.4} parent=0 // pred_check
    _
  $region7: #{basic_block_forward.4} parent=0 // pred_check_branch
    %12 = sbr.rel (0) target = $region9
  $region8: #{basic_block_forward.4} parent=0 // pred_region
    _
  $region9: #{basic_block_forward.4} parent=0 // pred_fallthru
    _
  %v13 = vld [vmem:[%s0] sm:$0xff]
  %v14 = vld [vmem:[%s0 + $0x8] sm:$0xff]
  %v15 = vld [vmem:[%s0 + $0x10] sm:$0xff]
  %v16 = vld [vmem:[%s0 + $0x18] sm:$0xff]
  %v17 = vld [vmem:[%s0 + $0x20] sm:$0xff]
  %v18 = vld [vmem:[%s1] sm:$0xff]
  %v19 = vld [vmem:[%s1 + $0x8] sm:$0xff]
  %v20 = vld [vmem:[%s1 + $0x10] sm:$0xff]
  %v21 = vld [vmem:[%s1 + $0x18] sm:$0xff]
  %v22 = vld [vmem:[%s1 + $0x20] sm:$0xff]
  %v23 = vld [vmem:[%s1 + $0x28] sm:$0xff]
  %v24 = vld [vmem:[%s1 + $0x30] sm:$0xff]
  %v25 = vld [vmem:[%s1 + $0x38] sm:$0xff]
  %v26 = vld [vmem:[%s1 + $0x40] sm:$0xff]
  %v27 = vld [vmem:[%s1 + $0x48] sm:$0xff]
  %v28 = vld [vmem:[%s1 + $0x50] sm:$0xff]
  %v29 = vld [vmem:[%s1 + $0x58] sm:$0xff]
  %v30 = vld [vmem:[%s1 + $0x60] sm:$0xff]
  %v31 = vld [vmem:[%s1 + $0x68] sm:$0xff]
  %v32 = vld [vmem:[%s1 + $0x70] sm:$0xff]
  %v33 = vld [vmem:[%s1 + $0x78] sm:$0xff]
  %v34 = vld [vmem:[%s1 + $0x80] sm:$0xff]
  %v35 = vld [vmem:[%s1 + $0x88] sm:$0xff]
  %v36 = vld [vmem:[%s1 + $0x90] sm:$0xff]
  %v37 = vld [vmem:[%s1 + $0x98] sm:$0xff]
  %v38 = vld [vmem:[%s1 + $0xa0] sm:$0xff]
  %v39 = vld [vmem:[%s1 + $0xa8] sm:$0xff]
  %v40 = vld [vmem:[%s1 + $0xb0] sm:$0xff]
  %v41 = vld [vmem:[%s1 + $0xb8] sm:$0xff]
  %v42 = vld [vmem:[%s1 + $0xc0] sm:$0xff]
  %v43 = vld [vmem:[%s1 + $0xc8] sm:$0xff]
  %v44 = vld [vmem:[%s1 + $0xd0] sm:$0xff]
  %v45 = vld [vmem:[%s1 + $0xd8] sm:$0xff]
  %v46 = vld [vmem:[%s1 + $0xe0] sm:$0xff]
  %v47 = vld [vmem:[%s1 + $0xe8] sm:$0xff]
  %v48 = vld [vmem:[%s1 + $0xf0] sm:$0xff]
  %v49 = vld [vmem:[%s1 + $0xf8] sm:$0xff]
  %v50 = vld [vmem:[%s1 + $0x100] sm:$0xff]
  %v51 = vld [vmem:[%s1 + $0x108] sm:$0xff]
  %v52 = vld [vmem:[%s1 + $0x110] sm:$0xff]
  %v53 = vld [vmem:[%s1 + $0x118] sm:$0xff]
  %v54 = vld [vmem:[%s1 + $0x120] sm:$0xff]
  %v55 = vld [vmem:[%s1 + $0x128] sm:$0xff]
  %v56 = vld [vmem:[%s1 + $0x130] sm:$0xff]
  %v57 = vld [vmem:[%s1 + $0x138] sm:$0xff]
  %v58 = vld [vmem:[%s1 + $0x140] sm:$0xff]
  %v59 = vld [vmem:[%s1 + $0x148] sm:$0xff]
  %v60 = vld [vmem:[%s1 + $0x150] sm:$0xff]
  %v61 = vld [vmem:[%s1 + $0x158] sm:$0xff]
  %v62 = vld [vmem:[%s1 + $0x160] sm:$0xff]
  %v63 = vld [vmem:[%s1 + $0x168] sm:$0xff]
  %v64 = vld [vmem:[%s1 + $0x170] sm:$0xff]
  %v65 = vld [vmem:[%s1 + $0x178] sm:$0xff]
  %v66 = vld [vmem:[%s1 + $0x180] sm:$0xff]
  %v67 = vld [vmem:[%s1 + $0x188] sm:$0xff]
  %v68 = vld [vmem:[%s1 + $0x190] sm:$0xff]
  %v69 = vld [vmem:[%s1 + $0x198] sm:$0xff]
  %v70 = vld [vmem:[%s1 + $0x1a0] sm:$0xff]
  %v71 = vld [vmem:[%s1 + $0x1a8] sm:$0xff]
  %v72 = vld [vmem:[%s1 + $0x1b0] sm:$0xff]
  %v73 = vld [vmem:[%s1 + $0x1b8] sm:$0xff]
  %v74 = vld [vmem:[%s1 + $0x1c0] sm:$0xff]
  %v75 = vld [vmem:[%s1 + $0x1c8] sm:$0xff]
  %v76 = vld [vmem:[%s1 + $0x1d0] sm:$0xff]
  %v77 = vld [vmem:[%s1 + $0x1d8] sm:$0xff]
  %v78 = vld [vmem:[%s1 + $0x1e0] sm:$0xff]
  %v79 = vld [vmem:[%s1 + $0x1e8] sm:$0xff]
  %v80 = vld [vmem:[%s1 + $0x1f0] sm:$0xff]
  %v81 = vld [vmem:[%s1 + $0x1f8] sm:$0xff]
  %v82 = vld [vmem:[%s1 + $0x200] sm:$0xff]
  %v83 = vld [vmem:[%s1 + $0x208] sm:$0xff]
  %v84 = vld [vmem:[%s1 + $0x210] sm:$0xff]
  %v85 = vld [vmem:[%s1 + $0x218] sm:$0xff]
  %v86 = vld [vmem:[%s1 + $0x220] sm:$0xff]
  %v87 = vld [vmem:[%s1 + $0x228] sm:$0xff]
  %v88 = vld [vmem:[%s1 + $0x230] sm:$0xff]
  %v89 = vld [vmem:[%s1 + $0x238] sm:$0xff]
  %vm90 = vcmask 523264
  %v92 = vsel %vm90, %v17, 0
  %94 = vmatprep.subr.mxu0 0.0
  %95 = vmatpush1.msra.mxu0 %v33
  %96 = vmatprep.subr.mxu0 0.0
  %97 = vmatpush1.msra.mxu0 %v32
  %98 = vmatprep.subr.mxu0 0.0
  %99 = vmatpush1.msra.mxu0 %v31
  %100 = vmatprep.subr.mxu0 0.0
  %101 = vmatpush1.msra.mxu0 %v30
  %102 = vmatprep.subr.mxu0 0.0
  %103 = vmatpush1.msra.mxu0 %v29
  %104 = vmatprep.subr.mxu0 0.0
  %105 = vmatpush1.msra.mxu0 %v28
  %106 = vmatprep.subr.mxu0 0.0
  %107 = vmatpush1.msra.mxu0 %v27
  %108 = vmatprep.subr.mxu0 0.0
  %109 = vmatpush1.msra.mxu0 %v26
  %110 = vmatprep.subr.mxu0 0.0
  %111 = vmatpush1.msra.mxu0 %v25
  %112 = vmatprep.subr.mxu0 0.0
  %113 = vmatpush1.msra.mxu0 %v24
  %114 = vmatprep.subr.mxu0 0.0
  %115 = vmatpush1.msra.mxu0 %v23
  %116 = vmatprep.subr.mxu0 0.0
  %117 = vmatpush1.msra.mxu0 %v22
  %118 = vmatprep.subr.mxu0 0.0
  %119 = vmatpush1.msra.mxu0 %v21
  %120 = vmatprep.subr.mxu0 0.0
  %121 = vmatpush1.msra.mxu0 %v20
  %122 = vmatprep.subr.mxu0 0.0
  %123 = vmatpush1.msra.mxu0 %v19
  %124 = vmatprep.subr.mxu0 0.0
  %125 = vmatpush1.msra.mxu0 %v18
  %126 = vmatprep.subr.mxu0 0.0
  %127 = vmatpush2.msra.mxu0 %v49
  %128 = vmatprep.subr.mxu0 0.0
  %129 = vmatpush2.msra.mxu0 %v48
  %130 = vmatprep.subr.mxu0 0.0
  %131 = vmatpush2.msra.mxu0 %v47
  %132 = vmatprep.subr.mxu0 0.0
  %133 = vmatpush2.msra.mxu0 %v46
  %134 = vmatprep.subr.mxu0 0.0
  %135 = vmatpush2.msra.mxu0 %v45
  %136 = vmatprep.subr.mxu0 0.0
  %137 = vmatpush2.msra.mxu0 %v44
  %138 = vmatprep.subr.mxu0 0.0
  %139 = vmatpush2.msra.mxu0 %v43
  %140 = vmatprep.subr.mxu0 0.0
  %141 = vmatpush2.msra.mxu0 %v42
  %142 = vmatprep.subr.mxu0 0.0
  %143 = vmatpush2.msra.mxu0 %v41
  %144 = vmatprep.subr.mxu0 0.0
  %145 = vmatpush2.msra.mxu0 %v40
  %146 = vmatprep.subr.mxu0 0.0
  %147 = vmatpush2.msra.mxu0 %v39
  %148 = vmatprep.subr.mxu0 0.0
  %149 = vmatpush2.msra.mxu0 %v38
  %150 = vmatprep.subr.mxu0 0.0
  %151 = vmatpush2.msra.mxu0 %v37
  %152 = vmatprep.subr.mxu0 0.0
  %153 = vmatpush2.msra.mxu0 %v36
  %154 = vmatprep.subr.mxu0 0.0
  %155 = vmatpush2.msra.mxu0 %v35
  %156 = vmatprep.subr.mxu0 0.0
  %157 = vmatpush2.msra.mxu0 %v34
  %158 = vmatprep.mubr.f32.mxu0 %v14
  %159 = vmatmul.mubr.f32.gmra.mxu0 %v13
  %v160 = vpop.f32.mrf.mxu0
  %v161 = vadd.f32 0.0, %v160
  %v162 = vpop.f32.mrf.mxu0
  %163 = vdwg.mxu0
  %164 = vmatprep.subr.mxu0 0.0
  %165 = vmatpush1.msra.mxu0 %v65
  %166 = vmatprep.subr.mxu0 0.0
  %167 = vmatpush1.msra.mxu0 %v64
  %168 = vmatprep.subr.mxu0 0.0
  %169 = vmatpush1.msra.mxu0 %v63
  %170 = vmatprep.subr.mxu0 0.0
  %171 = vmatpush1.msra.mxu0 %v62
  %172 = vmatprep.subr.mxu0 0.0
  %173 = vmatpush1.msra.mxu0 %v61
  %174 = vmatprep.subr.mxu0 0.0
  %175 = vmatpush1.msra.mxu0 %v60
  %176 = vmatprep.subr.mxu0 0.0
  %177 = vmatpush1.msra.mxu0 %v59
  %178 = vmatprep.subr.mxu0 0.0
  %179 = vmatpush1.msra.mxu0 %v58
  %180 = vmatprep.subr.mxu0 0.0
  %181 = vmatpush1.msra.mxu0 %v57
  %182 = vmatprep.subr.mxu0 0.0
  %183 = vmatpush1.msra.mxu0 %v56
  %184 = vmatprep.subr.mxu0 0.0
  %185 = vmatpush1.msra.mxu0 %v55
  %186 = vmatprep.subr.mxu0 0.0
  %187 = vmatpush1.msra.mxu0 %v54
  %188 = vmatprep.subr.mxu0 0.0
  %189 = vmatpush1.msra.mxu0 %v53
  %190 = vmatprep.subr.mxu0 0.0
  %191 = vmatpush1.msra.mxu0 %v52
  %192 = vmatprep.subr.mxu0 0.0
  %193 = vmatpush1.msra.mxu0 %v51
  %194 = vmatprep.subr.mxu0 0.0
  %195 = vmatpush1.msra.mxu0 %v50
  %196 = vmatprep.subr.mxu0 0.0
  %197 = vmatpush2.msra.mxu0 %v81
  %198 = vmatprep.subr.mxu0 0.0
  %199 = vmatpush2.msra.mxu0 %v80
  %200 = vmatprep.subr.mxu0 0.0
  %201 = vmatpush2.msra.mxu0 %v79
  %202 = vmatprep.subr.mxu0 0.0
  %203 = vmatpush2.msra.mxu0 %v78
  %204 = vmatprep.subr.mxu0 0.0
  %205 = vmatpush2.msra.mxu0 %v77
  %206 = vmatprep.subr.mxu0 0.0
  %207 = vmatpush2.msra.mxu0 %v76
  %208 = vmatprep.subr.mxu0 0.0
  %209 = vmatpush2.msra.mxu0 %v75
  %210 = vmatprep.subr.mxu0 0.0
  %211 = vmatpush2.msra.mxu0 %v74
  %212 = vmatprep.subr.mxu0 0.0
  %213 = vmatpush2.msra.mxu0 %v73
  %214 = vmatprep.subr.mxu0 0.0
  %215 = vmatpush2.msra.mxu0 %v72
  %216 = vmatprep.subr.mxu0 0.0
  %217 = vmatpush2.msra.mxu0 %v71
  %218 = vmatprep.subr.mxu0 0.0
  %219 = vmatpush2.msra.mxu0 %v70
  %220 = vmatprep.subr.mxu0 0.0
  %221 = vmatpush2.msra.mxu0 %v69
  %222 = vmatprep.subr.mxu0 0.0
  %223 = vmatpush2.msra.mxu0 %v68
  %224 = vmatprep.subr.mxu0 0.0
  %225 = vmatpush2.msra.mxu0 %v67
  %226 = vmatprep.subr.mxu0 0.0
  %227 = vmatpush2.msra.mxu0 %v66
  %228 = vmatprep.mubr.f32.mxu0 %v16
  %229 = vmatmul.mubr.f32.gmra.mxu0 %v15
  %v230 = vpop.f32.mrf.mxu0
  %v231 = vadd.f32 %v161, %v230
  %v232 = vpop.f32.mrf.mxu0
  %233 = vdwg.mxu0
  %234 = vmatprep.subr.mxu0 0.0
  %235 = vmatpush1.msra.mxu0 0.0
  %236 = vmatprep.subr.mxu0 0.0
  %237 = vmatpush1.msra.mxu0 0.0
  %238 = vmatprep.subr.mxu0 0.0
  %239 = vmatpush1.msra.mxu0 0.0
  %240 = vmatprep.subr.mxu0 0.0
  %241 = vmatpush1.msra.mxu0 0.0
  %242 = vmatprep.subr.mxu0 0.0
  %243 = vmatpush1.msra.mxu0 0.0
  %244 = vmatprep.subr.mxu0 0.0
  %245 = vmatpush1.msra.mxu0 0.0
  %246 = vmatprep.subr.mxu0 0.0
  %247 = vmatpush1.msra.mxu0 0.0
  %248 = vmatprep.subr.mxu0 0.0
  %249 = vmatpush1.msra.mxu0 0.0
  %250 = vmatprep.subr.mxu0 0.0
  %251 = vmatpush1.msra.mxu0 %v89
  %252 = vmatprep.subr.mxu0 0.0
  %253 = vmatpush1.msra.mxu0 %v88
  %254 = vmatprep.subr.mxu0 0.0
  %255 = vmatpush1.msra.mxu0 %v87
  %256 = vmatprep.subr.mxu0 0.0
  %257 = vmatpush1.msra.mxu0 %v86
  %258 = vmatprep.subr.mxu0 0.0
  %259 = vmatpush1.msra.mxu0 %v85
  %260 = vmatprep.subr.mxu0 0.0
  %261 = vmatpush1.msra.mxu0 %v84
  %262 = vmatprep.subr.mxu0 0.0
  %263 = vmatpush1.msra.mxu0 %v83
  %264 = vmatprep.subr.mxu0 0.0
  %265 = vmatpush1.msra.mxu0 %v82
  %266 = vmatprep.subr.mxu0 0.0
  %267 = vmatpush2.msra.mxu0 0.0
  %268 = vmatprep.subr.mxu0 0.0
  %269 = vmatpush2.msra.mxu0 0.0
  %270 = vmatprep.subr.mxu0 0.0
  %271 = vmatpush2.msra.mxu0 0.0
  %272 = vmatprep.subr.mxu0 0.0
  %273 = vmatpush2.msra.mxu0 0.0
  %274 = vmatprep.subr.mxu0 0.0
  %275 = vmatpush2.msra.mxu0 0.0
  %276 = vmatprep.subr.mxu0 0.0
  %277 = vmatpush2.msra.mxu0 0.0
  %278 = vmatprep.subr.mxu0 0.0
  %279 = vmatpush2.msra.mxu0 0.0
  %280 = vmatprep.subr.mxu0 0.0
  %281 = vmatpush2.msra.mxu0 0.0
  %282 = vmatprep.subr.mxu0 0.0
  %283 = vmatpush2.msra.mxu0 0.0
  %284 = vmatprep.subr.mxu0 0.0
  %285 = vmatpush2.msra.mxu0 0.0
  %286 = vmatprep.subr.mxu0 0.0
  %287 = vmatpush2.msra.mxu0 0.0
  %288 = vmatprep.subr.mxu0 0.0
  %289 = vmatpush2.msra.mxu0 0.0
  %290 = vmatprep.subr.mxu0 0.0
  %291 = vmatpush2.msra.mxu0 0.0
  %292 = vmatprep.subr.mxu0 0.0
  %293 = vmatpush2.msra.mxu0 0.0
  %294 = vmatprep.subr.mxu0 0.0
  %295 = vmatpush2.msra.mxu0 0.0
  %296 = vmatprep.subr.mxu0 0.0
  %297 = vmatpush2.msra.mxu0 0.0
  %298 = vmatprep.mubr.f32.mxu0 0.0
  %299 = vmatmul.mubr.f32.gmra.mxu0 %v92
  %v300 = vpop.f32.mrf.mxu0
  %v301 = vadd.f32 %v231, %v300
  %v302 = vpop.f32.mrf.mxu0
  %303 = vdwg.mxu0
  %304 = vst [vmem:[%s2] sm:$0xff] %v301
  %v305 = vrot.slane %v301, 4
  %v306 = vadd.f32 %v301, %v305
  %v307 = vrot.slane %v306, 2
  %v308 = vadd.f32 %v306, %v307
  %v309 = vrot.slane %v308, 1
  %v310 = vadd.f32 %v308, %v309
  %v311 = vmul.f32 %v301, %v301
  %v312 = vrot.slane %v311, 4
  %v313 = vadd.f32 %v311, %v312
  %v314 = vrot.slane %v313, 2
  %v315 = vadd.f32 %v313, %v314
  %v316 = vrot.slane %v315, 1
  %v317 = vadd.f32 %v315, %v316
  %vm318 = vcmask 1040384
  %v319 = vsel %vm318, %v310, %v317
  %vm320 = vcmask 1041408
  %v321 = vsel %vm320, %v319, 0.0
  %vm322 = vcmask 1042432
  %v323 = vsel %vm322, %v321, 0.0
  %vm324 = vcmask 1043456
  %v325 = vsel %vm324, %v323, 0.0
  %vm326 = vcmask 1044480
  %v327 = vsel %vm326, %v325, 0.0
  %vm328 = vcmask 1045504
  %v329 = vsel %vm328, %v327, 0.0
  %vm330 = vcmask 1046528
  %v331 = vsel %vm330, %v329, 0.0
  %332 = vst [vmem:[%s3] sm:$0xff] %v331
  // Predicated region
  $region10: #{basic_block_forward.4} parent=0 // pred_check
    _
  $region11: #{basic_block_forward.4} parent=0 // pred_check_branch
    %334 = sbr.rel (0) target = $region13
  $region12: #{basic_block_forward.4} parent=0 // pred_region
    _
  $region13: #{basic_block_forward.4} parent=0 // pred_fallthru
    _
  // Predicated region
  $region14: #{basic_block_forward.4} parent=0 // pred_check
    _
  $region15: #{basic_block_forward.4} parent=0 // pred_check_branch
    %336 = sbr.rel (0) target = $region17
  $region16: #{basic_block_forward.4} parent=0 // pred_region
    _
  $region17: #{basic_block_forward.4} parent=0 // pred_fallthru
    _
  // Predicated region
  $region18: #{basic_block_forward.4} parent=0 // pred_check
    _
  $region19: #{basic_block_forward.4} parent=0 // pred_check_branch
    %338 = sbr.rel (0) target = $region21
  $region20: #{basic_block_forward.4} parent=0 // pred_region
    _
  $region21: #{basic_block_forward.4} parent=0 // pred_fallthru
    _
  // Predicated region
  $region22: #{basic_block_forward.4} parent=0 // pred_check
    _
  $region23: #{basic_block_forward.4} parent=0 // pred_check_branch
    %340 = sbr.rel (0) target = $region25
  $region24: #{basic_block_forward.4} parent=0 // pred_region
    _
  $region25: #{basic_block_forward.4} parent=0 // pred_fallthru
    _

// kernel: basic_block_forward.5
$region0: #{basic_block_forward.5}
  #allocation0 [shape = 'u32[]', space=smem, size = 0x4, offset = 0x4, fixed_abs, tag = 'smem constant byte address 0x4 - core index']
  #allocation1 [shape = 'u32[144,128]{1,0:T(1,128)}', space=vmem, size = 0x12000, scoped, tag = 'internal scratch']
  %s0 = inlined_call_operand.vmem [shape: f32[8,128], index: 0, kind: input, shape index: {}]
  %s1 = inlined_call_operand.vmem [shape: f32[1,128], index: 1, kind: input, shape index: {}]
  %s2 = inlined_call_operand.vmem [shape: f32[1,128], index: 2, kind: input, shape index: {}]
  %s3 = inlined_call_operand.vmem [shape: f32[8,128], index: 3, kind: output, shape index: {}]
  %s4 = sld [smem:[#allocation0]]
  $region22: #{basic_block_forward.5} parent=0
    _
  %s6 = ssub.s32 1, %s4
  %s7 = scalar_select 0, %s6, %s4
  // Predicated region
  $region2: #{basic_block_forward.5} parent=0 // pred_check
    _
  $region3: #{basic_block_forward.5} parent=0 // pred_check_branch
    %9 = sbr.rel (0) target = $region5
  $region4: #{basic_block_forward.5} parent=0 // pred_region
    _
  $region5: #{basic_block_forward.5} parent=0 // pred_fallthru
    _
  // Predicated region
  $region6: #{basic_block_forward.5} parent=0 // pred_check
    _
  $region7: #{basic_block_forward.5} parent=0 // pred_check_branch
    %11 = sbr.rel (0) target = $region9
  $region8: #{basic_block_forward.5} parent=0 // pred_region
    _
  $region9: #{basic_block_forward.5} parent=0 // pred_fallthru
    _
  // Predicated region
  $region10: #{basic_block_forward.5} parent=0 // pred_check
    _
  $region11: #{basic_block_forward.5} parent=0 // pred_check_branch
    %13 = sbr.rel (0) target = $region13
  $region12: #{basic_block_forward.5} parent=0 // pred_region
    _
  $region13: #{basic_block_forward.5} parent=0 // pred_fallthru
    _
  %v14 = vld [vmem:[%s0] sm:$0xff]
  %v15 = vld [vmem:[%s1] sm:$0x1]
  %v17 = vlaneseq
  %v18 = vshrl.u32 %v17, 7
  %v19 = vsub.s32 0, %v18
  %v20 = vrot.slane %v15, %v19
  %v22 = vmul.f32 %v14, %v20
  %v23 = vld [vmem:[%s2] sm:$0x1]
  %v25 = vlaneseq
  %v26 = vshrl.u32 %v25, 7
  %v27 = vsub.s32 0, %v26
  %v28 = vrot.slane %v23, %v27
  %v30 = vadd.f32 %v22, %v28
  %v31 = vmax.f32 %v30, 0.0
  %32 = vst [vmem:[%s3] sm:$0xff] %v31
  // Predicated region
  $region14: #{basic_block_forward.5} parent=0 // pred_check
    _
  $region15: #{basic_block_forward.5} parent=0 // pred_check_branch
    %34 = sbr.rel (0) target = $region17
  $region16: #{basic_block_forward.5} parent=0 // pred_region
    _
  $region17: #{basic_block_forward.5} parent=0 // pred_fallthru
    _
  // Predicated region
  $region18: #{basic_block_forward.5} parent=0 // pred_check
    _
  $region19: #{basic_block_forward.5} parent=0 // pred_check_branch
    %36 = sbr.rel (0) target = $region21
  $region20: #{basic_block_forward.5} parent=0 // pred_region
    _
  $region21: #{basic_block_forward.5} parent=0 // pred_fallthru
    _

// kernel: mul.18
$region0: #{mul.18}
  %s0 = inlined_call_operand.vmem [shape: f32[3,3,8,8], index: 0, kind: input, shape index: {}]
  %s1 = inlined_call_operand.vmem [shape: f32[72,8], index: 1, kind: output, shape index: {}]
  $region1: #{mul.18} parent=0
    #allocation0 [shape = 'u8[98304]{0}', space=vmem, size = 0x18000, scoped, tag = 'scoped mem for input reshape']
    %s3 = sshll.u32 1, 4
    %s4 = ssub.s32 %s3, 1
    %s5 = smul.addr 4, 23
    %s6 = scalar_lea.vmem %s0, %s5
    %v7 = vld [vmem:[%s6] sm:%s4]
    %s8 = scalar_lea.vmem [#allocation0], 184
    %9 = vst [vmem:[%s8] sm:%s4] %v7
    %s10 = smul.addr 4, 22
    %s11 = scalar_lea.vmem %s0, %s10
    %v12 = vld [vmem:[%s11] sm:%s4]
    %s13 = scalar_lea.vmem [#allocation0], 176
    %14 = vst [vmem:[%s13] sm:%s4] %v12
    %s15 = smul.addr 4, 21
    %s16 = scalar_lea.vmem %s0, %s15
    %v17 = vld [vmem:[%s16] sm:%s4]
    %s18 = scalar_lea.vmem [#allocation0], 168
    %19 = vst [vmem:[%s18] sm:%s4] %v17
    %s20 = smul.addr 4, 20
    %s21 = scalar_lea.vmem %s0, %s20
    %v22 = vld [vmem:[%s21] sm:%s4]
    %s23 = scalar_lea.vmem [#allocation0], 160
    %24 = vst [vmem:[%s23] sm:%s4] %v22
    %s25 = smul.addr 4, 19
    %s26 = scalar_lea.vmem %s0, %s25
    %v27 = vld [vmem:[%s26] sm:%s4]
    %s28 = scalar_lea.vmem [#allocation0], 152
    %29 = vst [vmem:[%s28] sm:%s4] %v27
    %s30 = smul.addr 4, 18
    %s31 = scalar_lea.vmem %s0, %s30
    %v32 = vld [vmem:[%s31] sm:%s4]
    %s33 = scalar_lea.vmem [#allocation0], 144
    %34 = vst [vmem:[%s33] sm:%s4] %v32
    %s35 = smul.addr 4, 17
    %s36 = scalar_lea.vmem %s0, %s35
    %v37 = vld [vmem:[%s36] sm:%s4]
    %s38 = scalar_lea.vmem [#allocation0], 136
    %39 = vst [vmem:[%s38] sm:%s4] %v37
    %s40 = smul.addr 4, 16
    %s41 = scalar_lea.vmem %s0, %s40
    %v42 = vld [vmem:[%s41] sm:%s4]
    %s43 = scalar_lea.vmem [#allocation0], 128
    %44 = vst [vmem:[%s43] sm:%s4] %v42
    %s45 = smul.addr 4, 15
    %s46 = scalar_lea.vmem %s0, %s45
    %v47 = vld [vmem:[%s46] sm:%s4]
    %s48 = scalar_lea.vmem [#allocation0], 120
    %49 = vst [vmem:[%s48] sm:%s4] %v47
    %s50 = smul.addr 4, 14
    %s51 = scalar_lea.vmem %s0, %s50
    %v52 = vld [vmem:[%s51] sm:%s4]
    %s53 = scalar_lea.vmem [#allocation0], 112
    %54 = vst [vmem:[%s53] sm:%s4] %v52
    %s55 = smul.addr 4, 13
    %s56 = scalar_lea.vmem %s0, %s55
    %v57 = vld [vmem:[%s56] sm:%s4]
    %s58 = scalar_lea.vmem [#allocation0], 104
    %59 = vst [vmem:[%s58] sm:%s4] %v57
    %s60 = smul.addr 4, 12
    %s61 = scalar_lea.vmem %s0, %s60
    %v62 = vld [vmem:[%s61] sm:%s4]
    %s63 = scalar_lea.vmem [#allocation0], 96
    %64 = vst [vmem:[%s63] sm:%s4] %v62
    %s65 = smul.addr 4, 11
    %s66 = scalar_lea.vmem %s0, %s65
    %v67 = vld [vmem:[%s66] sm:%s4]
    %s68 = scalar_lea.vmem [#allocation0], 88
    %69 = vst [vmem:[%s68] sm:%s4] %v67
    %s70 = smul.addr 4, 10
    %s71 = scalar_lea.vmem %s0, %s70
    %v72 = vld [vmem:[%s71] sm:%s4]
    %s73 = scalar_lea.vmem [#allocation0], 80
    %74 = vst [vmem:[%s73] sm:%s4] %v72
    %s75 = smul.addr 4, 9
    %s76 = scalar_lea.vmem %s0, %s75
    %v77 = vld [vmem:[%s76] sm:%s4]
    %s78 = scalar_lea.vmem [#allocation0], 72
    %79 = vst [vmem:[%s78] sm:%s4] %v77
    %s80 = smul.addr 4, 8
    %s81 = scalar_lea.vmem %s0, %s80
    %v82 = vld [vmem:[%s81] sm:%s4]
    %s83 = scalar_lea.vmem [#allocation0], 64
    %84 = vst [vmem:[%s83] sm:%s4] %v82
    %s85 = smul.addr 4, 7
    %s86 = scalar_lea.vmem %s0, %s85
    %v87 = vld [vmem:[%s86] sm:%s4]
    %s88 = scalar_lea.vmem [#allocation0], 56
    %89 = vst [vmem:[%s88] sm:%s4] %v87
    %s90 = smul.addr 4, 6
    %s91 = scalar_lea.vmem %s0, %s90
    %v92 = vld [vmem:[%s91] sm:%s4]
    %s93 = scalar_lea.vmem [#allocation0], 48
    %94 = vst [vmem:[%s93] sm:%s4] %v92
    %s95 = smul.addr 4, 5
    %s96 = scalar_lea.vmem %s0, %s95
    %v97 = vld [vmem:[%s96] sm:%s4]
    %s98 = scalar_lea.vmem [#allocation0], 40
    %99 = vst [vmem:[%s98] sm:%s4] %v97
    %s100 = smul.addr 4, 4
    %s101 = scalar_lea.vmem %s0, %s100
    %v102 = vld [vmem:[%s101] sm:%s4]
    %s103 = scalar_lea.vmem [#allocation0], 32
    %104 = vst [vmem:[%s103] sm:%s4] %v102
    %s105 = smul.addr 4, 3
    %s106 = scalar_lea.vmem %s0, %s105
    %v107 = vld [vmem:[%s106] sm:%s4]
    %s108 = scalar_lea.vmem [#allocation0], 24
    %109 = vst [vmem:[%s108] sm:%s4] %v107
    %s110 = smul.addr 4, 2
    %s111 = scalar_lea.vmem %s0, %s110
    %v112 = vld [vmem:[%s111] sm:%s4]
    %s113 = scalar_lea.vmem [#allocation0], 16
    %114 = vst [vmem:[%s113] sm:%s4] %v112
    %s115 = scalar_lea.vmem %s0, 4
    %v116 = vld [vmem:[%s115] sm:%s4]
    %s117 = scalar_lea.vmem [#allocation0], 8
    %118 = vst [vmem:[%s117] sm:%s4] %v116
    %v119 = vld [vmem:[%s0] sm:%s4]
    %120 = vst [vmem:[#allocation0] sm:%s4] %v119
    %v121 = vld [vmem:[#allocation0] ss:$24 sm:$0xf]
    %v122 = vld [vmem:[#allocation0] ss:$24 sm:$0xf0]
    %vm123 = vcmask 1047556
    %v124 = vsel %vm123, %v122, %v121
    %vm125 = vcmask 64512
    %126 = vst.msk [vmem:[%s1] sm:$0xff] %vm125, %v124
    %s127 = scalar_lea.vmem [#allocation0], 18
    %v128 = vld [vmem:[%s127] ss:$24 sm:$0xf]
    %s129 = scalar_lea.vmem [#allocation0], 18
    %v130 = vld [vmem:[%s129] ss:$24 sm:$0xf0]
    %vm131 = vcmask 1047556
    %v132 = vsel %vm131, %v130, %v128
    %133 = vrot.lane.b32.xlu0 %v132, 64
    %v134 = vpop.permute.xlu0 %133
    %vm135 = vcmask 589312
    %136 = vst.msk [vmem:[%s1] sm:$0xff] %vm135, %v134
    %s137 = scalar_lea.vmem [#allocation0], 17
    %v138 = vld [vmem:[%s137] ss:$24 sm:$0xf]
    %s139 = scalar_lea.vmem [#allocation0], 17
    %v140 = vld [vmem:[%s139] ss:$24 sm:$0xf0]
    %vm141 = vcmask 1047556
    %v142 = vsel %vm141, %v140, %v138
    %143 = vrot.lane.b32.xlu0 %v142, 56
    %v144 = vpop.permute.xlu0 %143
    %vm145 = vcmask 523712
    %146 = vst.msk [vmem:[%s1] sm:$0xff] %vm145, %v144
    %s147 = scalar_lea.vmem [#allocation0], 16
    %v148 = vld [vmem:[%s147] ss:$24 sm:$0xf]
    %s149 = scalar_lea.vmem [#allocation0], 16
    %v150 = vld [vmem:[%s149] ss:$24 sm:$0xf0]
    %vm151 = vcmask 1047556
    %v152 = vsel %vm151, %v150, %v148
    %153 = vrot.lane.b32.xlu0 %v152, 48
    %v154 = vpop.permute.xlu0 %153
    %vm155 = vcmask 458112
    %156 = vst.msk [vmem:[%s1] sm:$0xff] %vm155, %v154
    %s157 = scalar_lea.vmem [#allocation0], 10
    %v158 = vld [vmem:[%s157] ss:$24 sm:$0xf]
    %s159 = scalar_lea.vmem [#allocation0], 10
    %v160 = vld [vmem:[%s159] ss:$24 sm:$0xf0]
    %vm161 = vcmask 1047556
    %v162 = vsel %vm161, %v160, %v158
    %163 = vrot.lane.b32.xlu0 %v162, 40
    %v164 = vpop.permute.xlu0 %163
    %vm165 = vcmask 392512
    %166 = vst.msk [vmem:[%s1] sm:$0xff] %vm165, %v164
    %s167 = scalar_lea.vmem [#allocation0], 9
    %v168 = vld [vmem:[%s167] ss:$24 sm:$0xf]
    %s169 = scalar_lea.vmem [#allocation0], 9
    %v170 = vld [vmem:[%s169] ss:$24 sm:$0xf0]
    %vm171 = vcmask 1047556
    %v172 = vsel %vm171, %v170, %v168
    %173 = vrot.lane.b32.xlu0 %v172, 32
    %v174 = vpop.permute.xlu0 %173
    %vm175 = vcmask 326912
    %176 = vst.msk [vmem:[%s1] sm:$0xff] %vm175, %v174
    %s177 = scalar_lea.vmem [#allocation0], 8
    %v178 = vld [vmem:[%s177] ss:$24 sm:$0xf]
    %s179 = scalar_lea.vmem [#allocation0], 8
    %v180 = vld [vmem:[%s179] ss:$24 sm:$0xf0]
    %vm181 = vcmask 1047556
    %v182 = vsel %vm181, %v180, %v178
    %183 = vrot.lane.b32.xlu0 %v182, 24
    %v184 = vpop.permute.xlu0 %183
    %vm185 = vcmask 261312
    %186 = vst.msk [vmem:[%s1] sm:$0xff] %vm185, %v184
    %s187 = scalar_lea.vmem [#allocation0], 2
    %v188 = vld [vmem:[%s187] ss:$24 sm:$0xf]
    %s189 = scalar_lea.vmem [#allocation0], 2
    %v190 = vld [vmem:[%s189] ss:$24 sm:$0xf0]
    %vm191 = vcmask 1047556
    %v192 = vsel %vm191, %v190, %v188
    %193 = vrot.lane.b32.xlu0 %v192, 16
    %v194 = vpop.permute.xlu0 %193
    %vm195 = vcmask 195712
    %196 = vst.msk [vmem:[%s1] sm:$0xff] %vm195, %v194
    %s197 = scalar_lea.vmem [#allocation0], 1
    %v198 = vld [vmem:[%s197] ss:$24 sm:$0xf]
    %s199 = scalar_lea.vmem [#allocation0], 1
    %v200 = vld [vmem:[%s199] ss:$24 sm:$0xf0]
    %vm201 = vcmask 1047556
    %v202 = vsel %vm201, %v200, %v198
    %203 = vrot.lane.b32.xlu0 %v202, 8
    %v204 = vpop.permute.xlu0 %203
    %vm205 = vcmask 130112
    %206 = vst.msk [vmem:[%s1] sm:$0xff] %vm205, %v204

// kernel: basic_block_forward.6
$region0: #{basic_block_forward.6}
  #allocation0 [shape = 'u32[]', space=smem, size = 0x4, offset = 0x4, fixed_abs, tag = 'smem constant byte address 0x4 - core index']
  #allocation1 [shape = 'u32[144,128]{1,0:T(1,128)}', space=vmem, size = 0x12000, scoped, tag = 'internal scratch']
  %s0 = inlined_call_operand.vmem [shape: f32[8,1152], index: 0, kind: input, shape index: {}]
  %s1 = inlined_call_operand.vmem [shape: f32[1152,128], index: 1, kind: input, shape index: {}]
  %s2 = inlined_call_operand.vmem [shape: f32[8,64], index: 2, kind: input, shape index: {}]
  %s3 = inlined_call_operand.vmem [shape: f32[64,128], index: 3, kind: input, shape index: {}]
  %s4 = inlined_call_operand.vmem [shape: f32[8,128], index: 4, kind: output, shape index: {0}]
  %s5 = inlined_call_operand.vmem [shape: f32[8,128], index: 5, kind: output, shape index: {1}]
  %6 = xla_tuple %s4, %s5
  %s7 = sld [smem:[#allocation0]]
  $region34: #{basic_block_forward.6} parent=0
    _
  %s9 = ssub.s32 1, %s7
  %s10 = scalar_select 0, %s9, %s7
  // Predicated region
  $region2: #{basic_block_forward.6} parent=0 // pred_check
    _
  $region3: #{basic_block_forward.6} parent=0 // pred_check_branch
    %12 = sbr.rel (0) target = $region5
  $region4: #{basic_block_forward.6} parent=0 // pred_region
    _
  $region5: #{basic_block_forward.6} parent=0 // pred_fallthru
    _
  // Predicated region
  $region6: #{basic_block_forward.6} parent=0 // pred_check
    _
  $region7: #{basic_block_forward.6} parent=0 // pred_check_branch
    %14 = sbr.rel (0) target = $region9
  $region8: #{basic_block_forward.6} parent=0 // pred_region
    _
  $region9: #{basic_block_forward.6} parent=0 // pred_fallthru
    _
  // Predicated region
  $region10: #{basic_block_forward.6} parent=0 // pred_check
    _
  $region11: #{basic_block_forward.6} parent=0 // pred_check_branch
    %16 = sbr.rel (0) target = $region13
  $region12: #{basic_block_forward.6} parent=0 // pred_region
    _
  $region13: #{basic_block_forward.6} parent=0 // pred_fallthru
    _
  // Predicated region
  $region14: #{basic_block_forward.6} parent=0 // pred_check
    _
  $region15: #{basic_block_forward.6} parent=0 // pred_check_branch
    %18 = sbr.rel (0) target = $region17
  $region16: #{basic_block_forward.6} parent=0 // pred_region
    _
  $region17: #{basic_block_forward.6} parent=0 // pred_fallthru
    _
  %v19 = vld [vmem:[%s0] sm:$0xff]
  %v20 = vld [vmem:[%s0 + $0x8] sm:$0xff]
  %v21 = vld [vmem:[%s0 + $0x10] sm:$0xff]
  %v22 = vld [vmem:[%s0 + $0x18] sm:$0xff]
  %v23 = vld [vmem:[%s0 + $0x20] sm:$0xff]
  %v24 = vld [vmem:[%s0 + $0x28] sm:$0xff]
  %v25 = vld [vmem:[%s0 + $0x30] sm:$0xff]
  %v26 = vld [vmem:[%s0 + $0x38] sm:$0xff]
  %v27 = vld [vmem:[%s0 + $0x40] sm:$0xff]
  %v28 = vld [vmem:[%s1] sm:$0xff]
  %v29 = vld [vmem:[%s1 + $0x8] sm:$0xff]
  %v30 = vld [vmem:[%s1 + $0x10] sm:$0xff]
  %v31 = vld [vmem:[%s1 + $0x18] sm:$0xff]
  %v32 = vld [vmem:[%s1 + $0x20] sm:$0xff]
  %v33 = vld [vmem:[%s1 + $0x28] sm:$0xff]
  %v34 = vld [vmem:[%s1 + $0x30] sm:$0xff]
  %v35 = vld [vmem:[%s1 + $0x38] sm:$0xff]
  %v36 = vld [vmem:[%s1 + $0x40] sm:$0xff]
  %v37 = vld [vmem:[%s1 + $0x48] sm:$0xff]
  %v38 = vld [vmem:[%s1 + $0x50] sm:$0xff]
  %v39 = vld [vmem:[%s1 + $0x58] sm:$0xff]
  %v40 = vld [vmem:[%s1 + $0x60] sm:$0xff]
  %v41 = vld [vmem:[%s1 + $0x68] sm:$0xff]
  %v42 = vld [vmem:[%s1 + $0x70] sm:$0xff]
  %v43 = vld [vmem:[%s1 + $0x78] sm:$0xff]
  %v44 = vld [vmem:[%s1 + $0x80] sm:$0xff]
  %v45 = vld [vmem:[%s1 + $0x88] sm:$0xff]
  %v46 = vld [vmem:[%s1 + $0x90] sm:$0xff]
  %v47 = vld [vmem:[%s1 + $0x98] sm:$0xff]
  %v48 = vld [vmem:[%s1 + $0xa0] sm:$0xff]
  %v49 = vld [vmem:[%s1 + $0xa8] sm:$0xff]
  %v50 = vld [vmem:[%s1 + $0xb0] sm:$0xff]
  %v51 = vld [vmem:[%s1 + $0xb8] sm:$0xff]
  %v52 = vld [vmem:[%s1 + $0xc0] sm:$0xff]
  %v53 = vld [vmem:[%s1 + $0xc8] sm:$0xff]
  %v54 = vld [vmem:[%s1 + $0xd0] sm:$0xff]
  %v55 = vld [vmem:[%s1 + $0xd8] sm:$0xff]
  %v56 = vld [vmem:[%s1 + $0xe0] sm:$0xff]
  %v57 = vld [vmem:[%s1 + $0xe8] sm:$0xff]
  %v58 = vld [vmem:[%s1 + $0xf0] sm:$0xff]
  %v59 = vld [vmem:[%s1 + $0xf8] sm:$0xff]
  %v60 = vld [vmem:[%s1 + $0x100] sm:$0xff]
  %v61 = vld [vmem:[%s1 + $0x108] sm:$0xff]
  %v62 = vld [vmem:[%s1 + $0x110] sm:$0xff]
  %v63 = vld [vmem:[%s1 + $0x118] sm:$0xff]
  %v64 = vld [vmem:[%s1 + $0x120] sm:$0xff]
  %v65 = vld [vmem:[%s1 + $0x128] sm:$0xff]
  %v66 = vld [vmem:[%s1 + $0x130] sm:$0xff]
  %v67 = vld [vmem:[%s1 + $0x138] sm:$0xff]
  %v68 = vld [vmem:[%s1 + $0x140] sm:$0xff]
  %v69 = vld [vmem:[%s1 + $0x148] sm:$0xff]
  %v70 = vld [vmem:[%s1 + $0x150] sm:$0xff]
  %v71 = vld [vmem:[%s1 + $0x158] sm:$0xff]
  %v72 = vld [vmem:[%s1 + $0x160] sm:$0xff]
  %v73 = vld [vmem:[%s1 + $0x168] sm:$0xff]
  %v74 = vld [vmem:[%s1 + $0x170] sm:$0xff]
  %v75 = vld [vmem:[%s1 + $0x178] sm:$0xff]
  %v76 = vld [vmem:[%s1 + $0x180] sm:$0xff]
  %v77 = vld [vmem:[%s1 + $0x188] sm:$0xff]
  %v78 = vld [vmem:[%s1 + $0x190] sm:$0xff]
  %v79 = vld [vmem:[%s1 + $0x198] sm:$0xff]
  %v80 = vld [vmem:[%s1 + $0x1a0] sm:$0xff]
  %v81 = vld [vmem:[%s1 + $0x1a8] sm:$0xff]
  %v82 = vld [vmem:[%s1 + $0x1b0] sm:$0xff]
  %v83 = vld [vmem:[%s1 + $0x1b8] sm:$0xff]
  %v84 = vld [vmem:[%s1 + $0x1c0] sm:$0xff]
  %v85 = vld [vmem:[%s1 + $0x1c8] sm:$0xff]
  %v86 = vld [vmem:[%s1 + $0x1d0] sm:$0xff]
  %v87 = vld [vmem:[%s1 + $0x1d8] sm:$0xff]
  %v88 = vld [vmem:[%s1 + $0x1e0] sm:$0xff]
  %v89 = vld [vmem:[%s1 + $0x1e8] sm:$0xff]
  %v90 = vld [vmem:[%s1 + $0x1f0] sm:$0xff]
  %v91 = vld [vmem:[%s1 + $0x1f8] sm:$0xff]
  %v92 = vld [vmem:[%s1 + $0x200] sm:$0xff]
  %v93 = vld [vmem:[%s1 + $0x208] sm:$0xff]
  %v94 = vld [vmem:[%s1 + $0x210] sm:$0xff]
  %v95 = vld [vmem:[%s1 + $0x218] sm:$0xff]
  %v96 = vld [vmem:[%s1 + $0x220] sm:$0xff]
  %v97 = vld [vmem:[%s1 + $0x228] sm:$0xff]
  %v98 = vld [vmem:[%s1 + $0x230] sm:$0xff]
  %v99 = vld [vmem:[%s1 + $0x238] sm:$0xff]
  %v100 = vld [vmem:[%s1 + $0x240] sm:$0xff]
  %v101 = vld [vmem:[%s1 + $0x248] sm:$0xff]
  %v102 = vld [vmem:[%s1 + $0x250] sm:$0xff]
  %v103 = vld [vmem:[%s1 + $0x258] sm:$0xff]
  %v104 = vld [vmem:[%s1 + $0x260] sm:$0xff]
  %v105 = vld [vmem:[%s1 + $0x268] sm:$0xff]
  %v106 = vld [vmem:[%s1 + $0x270] sm:$0xff]
  %v107 = vld [vmem:[%s1 + $0x278] sm:$0xff]
  %v108 = vld [vmem:[%s1 + $0x280] sm:$0xff]
  %v109 = vld [vmem:[%s1 + $0x288] sm:$0xff]
  %v110 = vld [vmem:[%s1 + $0x290] sm:$0xff]
  %v111 = vld [vmem:[%s1 + $0x298] sm:$0xff]
  %v112 = vld [vmem:[%s1 + $0x2a0] sm:$0xff]
  %v113 = vld [vmem:[%s1 + $0x2a8] sm:$0xff]
  %v114 = vld [vmem:[%s1 + $0x2b0] sm:$0xff]
  %v115 = vld [vmem:[%s1 + $0x2b8] sm:$0xff]
  %v116 = vld [vmem:[%s1 + $0x2c0] sm:$0xff]
  %v117 = vld [vmem:[%s1 + $0x2c8] sm:$0xff]
  %v118 = vld [vmem:[%s1 + $0x2d0] sm:$0xff]
  %v119 = vld [vmem:[%s1 + $0x2d8] sm:$0xff]
  %v120 = vld [vmem:[%s1 + $0x2e0] sm:$0xff]
  %v121 = vld [vmem:[%s1 + $0x2e8] sm:$0xff]
  %v122 = vld [vmem:[%s1 + $0x2f0] sm:$0xff]
  %v123 = vld [vmem:[%s1 + $0x2f8] sm:$0xff]
  %v124 = vld [vmem:[%s1 + $0x300] sm:$0xff]
  %v125 = vld [vmem:[%s1 + $0x308] sm:$0xff]
  %v126 = vld [vmem:[%s1 + $0x310] sm:$0xff]
  %v127 = vld [vmem:[%s1 + $0x318] sm:$0xff]
  %v128 = vld [vmem:[%s1 + $0x320] sm:$0xff]
  %v129 = vld [vmem:[%s1 + $0x328] sm:$0xff]
  %v130 = vld [vmem:[%s1 + $0x330] sm:$0xff]
  %v131 = vld [vmem:[%s1 + $0x338] sm:$0xff]
  %v132 = vld [vmem:[%s1 + $0x340] sm:$0xff]
  %v133 = vld [vmem:[%s1 + $0x348] sm:$0xff]
  %v134 = vld [vmem:[%s1 + $0x350] sm:$0xff]
  %v135 = vld [vmem:[%s1 + $0x358] sm:$0xff]
  %v136 = vld [vmem:[%s1 + $0x360] sm:$0xff]
  %v137 = vld [vmem:[%s1 + $0x368] sm:$0xff]
  %v138 = vld [vmem:[%s1 + $0x370] sm:$0xff]
  %v139 = vld [vmem:[%s1 + $0x378] sm:$0xff]
  %v140 = vld [vmem:[%s1 + $0x380] sm:$0xff]
  %v141 = vld [vmem:[%s1 + $0x388] sm:$0xff]
  %v142 = vld [vmem:[%s1 + $0x390] sm:$0xff]
  %v143 = vld [vmem:[%s1 + $0x398] sm:$0xff]
  %v144 = vld [vmem:[%s1 + $0x3a0] sm:$0xff]
  %v145 = vld [vmem:[%s1 + $0x3a8] sm:$0xff]
  %v146 = vld [vmem:[%s1 + $0x3b0] sm:$0xff]
  %v147 = vld [vmem:[%s1 + $0x3b8] sm:$0xff]
  %v148 = vld [vmem:[%s1 + $0x3c0] sm:$0xff]
  %v149 = vld [vmem:[%s1 + $0x3c8] sm:$0xff]
  %v150 = vld [vmem:[%s1 + $0x3d0] sm:$0xff]
  %v151 = vld [vmem:[%s1 + $0x3d8] sm:$0xff]
  %v152 = vld [vmem:[%s1 + $0x3e0] sm:$0xff]
  %v153 = vld [vmem:[%s1 + $0x3e8] sm:$0xff]
  %v154 = vld [vmem:[%s1 + $0x3f0] sm:$0xff]
  %v155 = vld [vmem:[%s1 + $0x3f8] sm:$0xff]
  %v156 = vld [vmem:[%s1 + $0x400] sm:$0xff]
  %v157 = vld [vmem:[%s1 + $0x408] sm:$0xff]
  %v158 = vld [vmem:[%s1 + $0x410] sm:$0xff]
  %v159 = vld [vmem:[%s1 + $0x418] sm:$0xff]
  %v160 = vld [vmem:[%s1 + $0x420] sm:$0xff]
  %v161 = vld [vmem:[%s1 + $0x428] sm:$0xff]
  %v162 = vld [vmem:[%s1 + $0x430] sm:$0xff]
  %v163 = vld [vmem:[%s1 + $0x438] sm:$0xff]
  %v164 = vld [vmem:[%s1 + $0x440] sm:$0xff]
  %v165 = vld [vmem:[%s1 + $0x448] sm:$0xff]
  %v166 = vld [vmem:[%s1 + $0x450] sm:$0xff]
  %v167 = vld [vmem:[%s1 + $0x458] sm:$0xff]
  %v168 = vld [vmem:[%s1 + $0x460] sm:$0xff]
  %v169 = vld [vmem:[%s1 + $0x468] sm:$0xff]
  %v170 = vld [vmem:[%s1 + $0x470] sm:$0xff]
  %v171 = vld [vmem:[%s1 + $0x478] sm:$0xff]
  %172 = vmatprep.subr.mxu0 0.0
  %173 = vmatpush1.msra.mxu0 %v43
  %174 = vmatprep.subr.mxu0 0.0
  %175 = vmatpush1.msra.mxu0 %v42
  %176 = vmatprep.subr.mxu0 0.0
  %177 = vmatpush1.msra.mxu0 %v41
  %178 = vmatprep.subr.mxu0 0.0
  %179 = vmatpush1.msra.mxu0 %v40
  %180 = vmatprep.subr.mxu0 0.0
  %181 = vmatpush1.msra.mxu0 %v39
  %182 = vmatprep.subr.mxu0 0.0
  %183 = vmatpush1.msra.mxu0 %v38
  %184 = vmatprep.subr.mxu0 0.0
  %185 = vmatpush1.msra.mxu0 %v37
  %186 = vmatprep.subr.mxu0 0.0
  %187 = vmatpush1.msra.mxu0 %v36
  %188 = vmatprep.subr.mxu0 0.0
  %189 = vmatpush1.msra.mxu0 %v35
  %190 = vmatprep.subr.mxu0 0.0
  %191 = vmatpush1.msra.mxu0 %v34
  %192 = vmatprep.subr.mxu0 0.0
  %193 = vmatpush1.msra.mxu0 %v33
  %194 = vmatprep.subr.mxu0 0.0
  %195 = vmatpush1.msra.mxu0 %v32
  %196 = vmatprep.subr.mxu0 0.0
  %197 = vmatpush1.msra.mxu0 %v31
  %198 = vmatprep.subr.mxu0 0.0
  %199 = vmatpush1.msra.mxu0 %v30
  %200 = vmatprep.subr.mxu0 0.0
  %201 = vmatpush1.msra.mxu0 %v29
  %202 = vmatprep.subr.mxu0 0.0
  %203 = vmatpush1.msra.mxu0 %v28
  %204 = vmatprep.subr.mxu0 0.0
  %205 = vmatpush2.msra.mxu0 %v59
  %206 = vmatprep.subr.mxu0 0.0
  %207 = vmatpush2.msra.mxu0 %v58
  %208 = vmatprep.subr.mxu0 0.0
  %209 = vmatpush2.msra.mxu0 %v57
  %210 = vmatprep.subr.mxu0 0.0
  %211 = vmatpush2.msra.mxu0 %v56
  %212 = vmatprep.subr.mxu0 0.0
  %213 = vmatpush2.msra.mxu0 %v55
  %214 = vmatprep.subr.mxu0 0.0
  %215 = vmatpush2.msra.mxu0 %v54
  %216 = vmatprep.subr.mxu0 0.0
  %217 = vmatpush2.msra.mxu0 %v53
  %218 = vmatprep.subr.mxu0 0.0
  %219 = vmatpush2.msra.mxu0 %v52
  %220 = vmatprep.subr.mxu0 0.0
  %221 = vmatpush2.msra.mxu0 %v51
  %222 = vmatprep.subr.mxu0 0.0
  %223 = vmatpush2.msra.mxu0 %v50
  %224 = vmatprep.subr.mxu0 0.0
  %225 = vmatpush2.msra.mxu0 %v49
  %226 = vmatprep.subr.mxu0 0.0
  %227 = vmatpush2.msra.mxu0 %v48
  %228 = vmatprep.subr.mxu0 0.0
  %229 = vmatpush2.msra.mxu0 %v47
  %230 = vmatprep.subr.mxu0 0.0
  %231 = vmatpush2.msra.mxu0 %v46
  %232 = vmatprep.subr.mxu0 0.0
  %233 = vmatpush2.msra.mxu0 %v45
  %234 = vmatprep.subr.mxu0 0.0
  %235 = vmatpush2.msra.mxu0 %v44
  %236 = vmatprep.mubr.f32.mxu0 %v20
  %237 = vmatmul.mubr.f32.gmra.mxu0 %v19
  %v238 = vpop.f32.mrf.mxu0
  %v239 = vadd.f32 0.0, %v238
  %v240 = vpop.f32.mrf.mxu0
  %241 = vdwg.mxu0
  %242 = vmatprep.subr.mxu0 0.0
  %243 = vmatpush1.msra.mxu0 %v75
  %244 = vmatprep.subr.mxu0 0.0
  %245 = vmatpush1.msra.mxu0 %v74
  %246 = vmatprep.subr.mxu0 0.0
  %247 = vmatpush1.msra.mxu0 %v73
  %248 = vmatprep.subr.mxu0 0.0
  %249 = vmatpush1.msra.mxu0 %v72
  %250 = vmatprep.subr.mxu0 0.0
  %251 = vmatpush1.msra.mxu0 %v71
  %252 = vmatprep.subr.mxu0 0.0
  %253 = vmatpush1.msra.mxu0 %v70
  %254 = vmatprep.subr.mxu0 0.0
  %255 = vmatpush1.msra.mxu0 %v69
  %256 = vmatprep.subr.mxu0 0.0
  %257 = vmatpush1.msra.mxu0 %v68
  %258 = vmatprep.subr.mxu0 0.0
  %259 = vmatpush1.msra.mxu0 %v67
  %260 = vmatprep.subr.mxu0 0.0
  %261 = vmatpush1.msra.mxu0 %v66
  %262 = vmatprep.subr.mxu0 0.0
  %263 = vmatpush1.msra.mxu0 %v65
  %264 = vmatprep.subr.mxu0 0.0
  %265 = vmatpush1.msra.mxu0 %v64
  %266 = vmatprep.subr.mxu0 0.0
  %267 = vmatpush1.msra.mxu0 %v63
  %268 = vmatprep.subr.mxu0 0.0
  %269 = vmatpush1.msra.mxu0 %v62
  %270 = vmatprep.subr.mxu0 0.0
  %271 = vmatpush1.msra.mxu0 %v61
  %272 = vmatprep.subr.mxu0 0.0
  %273 = vmatpush1.msra.mxu0 %v60
  %274 = vmatprep.subr.mxu0 0.0
  %275 = vmatpush2.msra.mxu0 %v91
  %276 = vmatprep.subr.mxu0 0.0
  %277 = vmatpush2.msra.mxu0 %v90
  %278 = vmatprep.subr.mxu0 0.0
  %279 = vmatpush2.msra.mxu0 %v89
  %280 = vmatprep.subr.mxu0 0.0
  %281 = vmatpush2.msra.mxu0 %v88
  %282 = vmatprep.subr.mxu0 0.0
  %283 = vmatpush2.msra.mxu0 %v87
  %284 = vmatprep.subr.mxu0 0.0
  %285 = vmatpush2.msra.mxu0 %v86
  %286 = vmatprep.subr.mxu0 0.0
  %287 = vmatpush2.msra.mxu0 %v85
  %288 = vmatprep.subr.mxu0 0.0
  %289 = vmatpush2.msra.mxu0 %v84
  %290 = vmatprep.subr.mxu0 0.0
  %291 = vmatpush2.msra.mxu0 %v83
  %292 = vmatprep.subr.mxu0 0.0
  %293 = vmatpush2.msra.mxu0 %v82
  %294 = vmatprep.subr.mxu0 0.0
  %295 = vmatpush2.msra.mxu0 %v81
  %296 = vmatprep.subr.mxu0 0.0
  %297 = vmatpush2.msra.mxu0 %v80
  %298 = vmatprep.subr.mxu0 0.0
  %299 = vmatpush2.msra.mxu0 %v79
  %300 = vmatprep.subr.mxu0 0.0
  %301 = vmatpush2.msra.mxu0 %v78
  %302 = vmatprep.subr.mxu0 0.0
  %303 = vmatpush2.msra.mxu0 %v77
  %304 = vmatprep.subr.mxu0 0.0
  %305 = vmatpush2.msra.mxu0 %v76
  %306 = vmatprep.mubr.f32.mxu0 %v22
  %307 = vmatmul.mubr.f32.gmra.mxu0 %v21
  %v308 = vpop.f32.mrf.mxu0
  %v309 = vadd.f32 %v239, %v308
  %v310 = vpop.f32.mrf.mxu0
  %311 = vdwg.mxu0
  %312 = vmatprep.subr.mxu0 0.0
  %313 = vmatpush1.msra.mxu0 %v107
  %314 = vmatprep.subr.mxu0 0.0
  %315 = vmatpush1.msra.mxu0 %v106
  %316 = vmatprep.subr.mxu0 0.0
  %317 = vmatpush1.msra.mxu0 %v105
  %318 = vmatprep.subr.mxu0 0.0
  %319 = vmatpush1.msra.mxu0 %v104
  %320 = vmatprep.subr.mxu0 0.0
  %321 = vmatpush1.msra.mxu0 %v103
  %322 = vmatprep.subr.mxu0 0.0
  %323 = vmatpush1.msra.mxu0 %v102
  %324 = vmatprep.subr.mxu0 0.0
  %325 = vmatpush1.msra.mxu0 %v101
  %326 = vmatprep.subr.mxu0 0.0
  %327 = vmatpush1.msra.mxu0 %v100
  %328 = vmatprep.subr.mxu0 0.0
  %329 = vmatpush1.msra.mxu0 %v99
  %330 = vmatprep.subr.mxu0 0.0
  %331 = vmatpush1.msra.mxu0 %v98
  %332 = vmatprep.subr.mxu0 0.0
  %333 = vmatpush1.msra.mxu0 %v97
  %334 = vmatprep.subr.mxu0 0.0
  %335 = vmatpush1.msra.mxu0 %v96
  %336 = vmatprep.subr.mxu0 0.0
  %337 = vmatpush1.msra.mxu0 %v95
  %338 = vmatprep.subr.mxu0 0.0
  %339 = vmatpush1.msra.mxu0 %v94
  %340 = vmatprep.subr.mxu0 0.0
  %341 = vmatpush1.msra.mxu0 %v93
  %342 = vmatprep.subr.mxu0 0.0
  %343 = vmatpush1.msra.mxu0 %v92
  %344 = vmatprep.subr.mxu0 0.0
  %345 = vmatpush2.msra.mxu0 %v123
  %346 = vmatprep.subr.mxu0 0.0
  %347 = vmatpush2.msra.mxu0 %v122
  %348 = vmatprep.subr.mxu0 0.0
  %349 = vmatpush2.msra.mxu0 %v121
  %350 = vmatprep.subr.mxu0 0.0
  %351 = vmatpush2.msra.mxu0 %v120
  %352 = vmatprep.subr.mxu0 0.0
  %353 = vmatpush2.msra.mxu0 %v119
  %354 = vmatprep.subr.mxu0 0.0
  %355 = vmatpush2.msra.mxu0 %v118
  %356 = vmatprep.subr.mxu0 0.0
  %357 = vmatpush2.msra.mxu0 %v117
  %358 = vmatprep.subr.mxu0 0.0
  %359 = vmatpush2.msra.mxu0 %v116
  %360 = vmatprep.subr.mxu0 0.0
  %361 = vmatpush2.msra.mxu0 %v115
  %362 = vmatprep.subr.mxu0 0.0
  %363 = vmatpush2.msra.mxu0 %v114
  %364 = vmatprep.subr.mxu0 0.0
  %365 = vmatpush2.msra.mxu0 %v113
  %366 = vmatprep.subr.mxu0 0.0
  %367 = vmatpush2.msra.mxu0 %v112
  %368 = vmatprep.subr.mxu0 0.0
  %369 = vmatpush2.msra.mxu0 %v111
  %370 = vmatprep.subr.mxu0 0.0
  %371 = vmatpush2.msra.mxu0 %v110
  %372 = vmatprep.subr.mxu0 0.0
  %373 = vmatpush2.msra.mxu0 %v109
  %374 = vmatprep.subr.mxu0 0.0
  %375 = vmatpush2.msra.mxu0 %v108
  %376 = vmatprep.mubr.f32.mxu0 %v24
  %377 = vmatmul.mubr.f32.gmra.mxu0 %v23
  %v378 = vpop.f32.mrf.mxu0
  %v379 = vadd.f32 %v309, %v378
  %v380 = vpop.f32.mrf.mxu0
  %381 = vdwg.mxu0
  %382 = vmatprep.subr.mxu0 0.0
  %383 = vmatpush1.msra.mxu0 %v139
  %384 = vmatprep.subr.mxu0 0.0
  %385 = vmatpush1.msra.mxu0 %v138
  %386 = vmatprep.subr.mxu0 0.0
  %387 = vmatpush1.msra.mxu0 %v137
  %388 = vmatprep.subr.mxu0 0.0
  %389 = vmatpush1.msra.mxu0 %v136
  %390 = vmatprep.subr.mxu0 0.0
  %391 = vmatpush1.msra.mxu0 %v135
  %392 = vmatprep.subr.mxu0 0.0
  %393 = vmatpush1.msra.mxu0 %v134
  %394 = vmatprep.subr.mxu0 0.0
  %395 = vmatpush1.msra.mxu0 %v133
  %396 = vmatprep.subr.mxu0 0.0
  %397 = vmatpush1.msra.mxu0 %v132
  %398 = vmatprep.subr.mxu0 0.0
  %399 = vmatpush1.msra.mxu0 %v131
  %400 = vmatprep.subr.mxu0 0.0
  %401 = vmatpush1.msra.mxu0 %v130
  %402 = vmatprep.subr.mxu0 0.0
  %403 = vmatpush1.msra.mxu0 %v129
  %404 = vmatprep.subr.mxu0 0.0
  %405 = vmatpush1.msra.mxu0 %v128
  %406 = vmatprep.subr.mxu0 0.0
  %407 = vmatpush1.msra.mxu0 %v127
  %408 = vmatprep.subr.mxu0 0.0
  %409 = vmatpush1.msra.mxu0 %v126
  %410 = vmatprep.subr.mxu0 0.0
  %411 = vmatpush1.msra.mxu0 %v125
  %412 = vmatprep.subr.mxu0 0.0
  %413 = vmatpush1.msra.mxu0 %v124
  %414 = vmatprep.subr.mxu0 0.0
  %415 = vmatpush2.msra.mxu0 %v155
  %416 = vmatprep.subr.mxu0 0.0
  %417 = vmatpush2.msra.mxu0 %v154
  %418 = vmatprep.subr.mxu0 0.0
  %419 = vmatpush2.msra.mxu0 %v153
  %420 = vmatprep.subr.mxu0 0.0
  %421 = vmatpush2.msra.mxu0 %v152
  %422 = vmatprep.subr.mxu0 0.0
  %423 = vmatpush2.msra.mxu0 %v151
  %424 = vmatprep.subr.mxu0 0.0
  %425 = vmatpush2.msra.mxu0 %v150
  %426 = vmatprep.subr.mxu0 0.0
  %427 = vmatpush2.msra.mxu0 %v149
  %428 = vmatprep.subr.mxu0 0.0
  %429 = vmatpush2.msra.mxu0 %v148
  %430 = vmatprep.subr.mxu0 0.0
  %431 = vmatpush2.msra.mxu0 %v147
  %432 = vmatprep.subr.mxu0 0.0
  %433 = vmatpush2.msra.mxu0 %v146
  %434 = vmatprep.subr.mxu0 0.0
  %435 = vmatpush2.msra.mxu0 %v145
  %436 = vmatprep.subr.mxu0 0.0
  %437 = vmatpush2.msra.mxu0 %v144
  %438 = vmatprep.subr.mxu0 0.0
  %439 = vmatpush2.msra.mxu0 %v143
  %440 = vmatprep.subr.mxu0 0.0
  %441 = vmatpush2.msra.mxu0 %v142
  %442 = vmatprep.subr.mxu0 0.0
  %443 = vmatpush2.msra.mxu0 %v141
  %444 = vmatprep.subr.mxu0 0.0
  %445 = vmatpush2.msra.mxu0 %v140
  %446 = vmatprep.mubr.f32.mxu0 %v26
  %447 = vmatmul.mubr.f32.gmra.mxu0 %v25
  %v448 = vpop.f32.mrf.mxu0
  %v449 = vadd.f32 %v379, %v448
  %v450 = vpop.f32.mrf.mxu0
  %451 = vdwg.mxu0
  %452 = vmatprep.subr.mxu0 0.0
  %453 = vmatpush1.msra.mxu0 %v171
  %454 = vmatprep.subr.mxu0 0.0
  %455 = vmatpush1.msra.mxu0 %v170
  %456 = vmatprep.subr.mxu0 0.0
  %457 = vmatpush1.msra.mxu0 %v169
  %458 = vmatprep.subr.mxu0 0.0
  %459 = vmatpush1.msra.mxu0 %v168
  %460 = vmatprep.subr.mxu0 0.0
  %461 = vmatpush1.msra.mxu0 %v167
  %462 = vmatprep.subr.mxu0 0.0
  %463 = vmatpush1.msra.mxu0 %v166
  %464 = vmatprep.subr.mxu0 0.0
  %465 = vmatpush1.msra.mxu0 %v165
  %466 = vmatprep.subr.mxu0 0.0
  %467 = vmatpush1.msra.mxu0 %v164
  %468 = vmatprep.subr.mxu0 0.0
  %469 = vmatpush1.msra.mxu0 %v163
  %470 = vmatprep.subr.mxu0 0.0
  %471 = vmatpush1.msra.mxu0 %v162
  %472 = vmatprep.subr.mxu0 0.0
  %473 = vmatpush1.msra.mxu0 %v161
  %474 = vmatprep.subr.mxu0 0.0
  %475 = vmatpush1.msra.mxu0 %v160
  %476 = vmatprep.subr.mxu0 0.0
  %477 = vmatpush1.msra.mxu0 %v159
  %478 = vmatprep.subr.mxu0 0.0
  %479 = vmatpush1.msra.mxu0 %v158
  %480 = vmatprep.subr.mxu0 0.0
  %481 = vmatpush1.msra.mxu0 %v157
  %482 = vmatprep.subr.mxu0 0.0
  %483 = vmatpush1.msra.mxu0 %v156
  %484 = vmatprep.subr.mxu0 0.0
  %485 = vmatpush2.msra.mxu0 0.0
  %486 = vmatprep.subr.mxu0 0.0
  %487 = vmatpush2.msra.mxu0 0.0
  %488 = vmatprep.subr.mxu0 0.0
  %489 = vmatpush2.msra.mxu0 0.0
  %490 = vmatprep.subr.mxu0 0.0
  %491 = vmatpush2.msra.mxu0 0.0
  %492 = vmatprep.subr.mxu0 0.0
  %493 = vmatpush2.msra.mxu0 0.0
  %494 = vmatprep.subr.mxu0 0.0
  %495 = vmatpush2.msra.mxu0 0.0
  %496 = vmatprep.subr.mxu0 0.0
  %497 = vmatpush2.msra.mxu0 0.0
  %498 = vmatprep.subr.mxu0 0.0
  %499 = vmatpush2.msra.mxu0 0.0
  %500 = vmatprep.subr.mxu0 0.0
  %501 = vmatpush2.msra.mxu0 0.0
  %502 = vmatprep.subr.mxu0 0.0
  %503 = vmatpush2.msra.mxu0 0.0
  %504 = vmatprep.subr.mxu0 0.0
  %505 = vmatpush2.msra.mxu0 0.0
  %506 = vmatprep.subr.mxu0 0.0
  %507 = vmatpush2.msra.mxu0 0.0
  %508 = vmatprep.subr.mxu0 0.0
  %509 = vmatpush2.msra.mxu0 0.0
  %510 = vmatprep.subr.mxu0 0.0
  %511 = vmatpush2.msra.mxu0 0.0
  %512 = vmatprep.subr.mxu0 0.0
  %513 = vmatpush2.msra.mxu0 0.0
  %514 = vmatprep.subr.mxu0 0.0
  %515 = vmatpush2.msra.mxu0 0.0
  %516 = vmatprep.mubr.f32.mxu0 0.0
  %517 = vmatmul.mubr.f32.gmra.mxu0 %v27
  %v518 = vpop.f32.mrf.mxu0
  %v519 = vadd.f32 %v449, %v518
  %v520 = vpop.f32.mrf.mxu0
  %521 = vdwg.mxu0
  %v522 = vld [vmem:[%s2] sm:$0xff]
  %v523 = vld [vmem:[%s3] sm:$0xff]
  %v524 = vld [vmem:[%s3 + $0x8] sm:$0xff]
  %v525 = vld [vmem:[%s3 + $0x10] sm:$0xff]
  %v526 = vld [vmem:[%s3 + $0x18] sm:$0xff]
  %v527 = vld [vmem:[%s3 + $0x20] sm:$0xff]
  %v528 = vld [vmem:[%s3 + $0x28] sm:$0xff]
  %v529 = vld [vmem:[%s3 + $0x30] sm:$0xff]
  %v530 = vld [vmem:[%s3 + $0x38] sm:$0xff]
  %vm531 = vcmask 523264
  %v533 = vsel %vm531, %v522, 0
  %535 = vmatprep.subr.mxu0 0.0
  %536 = vmatpush1.msra.mxu0 0.0
  %537 = vmatprep.subr.mxu0 0.0
  %538 = vmatpush1.msra.mxu0 0.0
  %539 = vmatprep.subr.mxu0 0.0
  %540 = vmatpush1.msra.mxu0 0.0
  %541 = vmatprep.subr.mxu0 0.0
  %542 = vmatpush1.msra.mxu0 0.0
  %543 = vmatprep.subr.mxu0 0.0
  %544 = vmatpush1.msra.mxu0 0.0
  %545 = vmatprep.subr.mxu0 0.0
  %546 = vmatpush1.msra.mxu0 0.0
  %547 = vmatprep.subr.mxu0 0.0
  %548 = vmatpush1.msra.mxu0 0.0
  %549 = vmatprep.subr.mxu0 0.0
  %550 = vmatpush1.msra.mxu0 0.0
  %551 = vmatprep.subr.mxu0 0.0
  %552 = vmatpush1.msra.mxu0 %v530
  %553 = vmatprep.subr.mxu0 0.0
  %554 = vmatpush1.msra.mxu0 %v529
  %555 = vmatprep.subr.mxu0 0.0
  %556 = vmatpush1.msra.mxu0 %v528
  %557 = vmatprep.subr.mxu0 0.0
  %558 = vmatpush1.msra.mxu0 %v527
  %559 = vmatprep.subr.mxu0 0.0
  %560 = vmatpush1.msra.mxu0 %v526
  %561 = vmatprep.subr.mxu0 0.0
  %562 = vmatpush1.msra.mxu0 %v525
  %563 = vmatprep.subr.mxu0 0.0
  %564 = vmatpush1.msra.mxu0 %v524
  %565 = vmatprep.subr.mxu0 0.0
  %566 = vmatpush1.msra.mxu0 %v523
  %567 = vmatprep.subr.mxu0 0.0
  %568 = vmatpush2.msra.mxu0 0.0
  %569 = vmatprep.subr.mxu0 0.0
  %570 = vmatpush2.msra.mxu0 0.0
  %571 = vmatprep.subr.mxu0 0.0
  %572 = vmatpush2.msra.mxu0 0.0
  %573 = vmatprep.subr.mxu0 0.0
  %574 = vmatpush2.msra.mxu0 0.0
  %575 = vmatprep.subr.mxu0 0.0
  %576 = vmatpush2.msra.mxu0 0.0
  %577 = vmatprep.subr.mxu0 0.0
  %578 = vmatpush2.msra.mxu0 0.0
  %579 = vmatprep.subr.mxu0 0.0
  %580 = vmatpush2.msra.mxu0 0.0
  %581 = vmatprep.subr.mxu0 0.0
  %582 = vmatpush2.msra.mxu0 0.0
  %583 = vmatprep.subr.mxu0 0.0
  %584 = vmatpush2.msra.mxu0 0.0
  %585 = vmatprep.subr.mxu0 0.0
  %586 = vmatpush2.msra.mxu0 0.0
  %587 = vmatprep.subr.mxu0 0.0
  %588 = vmatpush2.msra.mxu0 0.0
  %589 = vmatprep.subr.mxu0 0.0
  %590 = vmatpush2.msra.mxu0 0.0
  %591 = vmatprep.subr.mxu0 0.0
  %592 = vmatpush2.msra.mxu0 0.0
  %593 = vmatprep.subr.mxu0 0.0
  %594 = vmatpush2.msra.mxu0 0.0
  %595 = vmatprep.subr.mxu0 0.0
  %596 = vmatpush2.msra.mxu0 0.0
  %597 = vmatprep.subr.mxu0 0.0
  %598 = vmatpush2.msra.mxu0 0.0
  %599 = vmatprep.mubr.f32.mxu0 0.0
  %600 = vmatmul.mubr.f32.gmra.mxu0 %v533
  %v601 = vpop.f32.mrf.mxu0
  %v602 = vadd.f32 0.0, %v601
  %v603 = vpop.f32.mrf.mxu0
  %604 = vdwg.mxu0
  %605 = vst [vmem:[%s4] sm:$0xff] %v519
  %v606 = vrot.slane %v519, 4
  %v607 = vadd.f32 %v519, %v606
  %v608 = vrot.slane %v607, 2
  %v609 = vadd.f32 %v607, %v608
  %v610 = vrot.slane %v609, 1
  %v611 = vadd.f32 %v609, %v610
  %v612 = vmul.f32 %v519, %v519
  %v613 = vrot.slane %v612, 4
  %v614 = vadd.f32 %v612, %v613
  %v615 = vrot.slane %v614, 2
  %v616 = vadd.f32 %v614, %v615
  %v617 = vrot.slane %v616, 1
  %v618 = vadd.f32 %v616, %v617
  %v619 = vrot.slane %v602, 4
  %v620 = vadd.f32 %v602, %v619
  %v621 = vrot.slane %v620, 2
  %v622 = vadd.f32 %v620, %v621
  %v623 = vrot.slane %v622, 1
  %v624 = vadd.f32 %v622, %v623
  %v625 = vmul.f32 %v602, %v602
  %v626 = vrot.slane %v625, 4
  %v627 = vadd.f32 %v625, %v626
  %v628 = vrot.slane %v627, 2
  %v629 = vadd.f32 %v627, %v628
  %v630 = vrot.slane %v629, 1
  %v631 = vadd.f32 %v629, %v630
  %vm632 = vcmask 1040384
  %v633 = vsel %vm632, %v611, %v618
  %vm634 = vcmask 1041408
  %v635 = vsel %vm634, %v633, %v624
  %vm636 = vcmask 1042432
  %v637 = vsel %vm636, %v635, %v631
  %vm638 = vcmask 1043456
  %v639 = vsel %vm638, %v637, 0.0
  %vm640 = vcmask 1044480
  %v641 = vsel %vm640, %v639, 0.0
  %vm642 = vcmask 1045504
  %v643 = vsel %vm642, %v641, 0.0
  %vm644 = vcmask 1046528
  %v645 = vsel %vm644, %v643, 0.0
  %646 = vst [vmem:[%s5] sm:$0xff] %v645
  // Predicated region
  $region18: #{basic_block_forward.6} parent=0 // pred_check
    _
  $region19: #{basic_block_forward.6} parent=0 // pred_check_branch
    %648 = sbr.rel (0) target = $region21
  $region20: #{basic_block_forward.6} parent=0 // pred_region
    _
  $region21: #{basic_block_forward.6} parent=0 // pred_fallthru
    _
  // Predicated region
  $region22: #{basic_block_forward.6} parent=0 // pred_check
    _
  $region23: #{basic_block_forward.6} parent=0 // pred_check_branch
    %650 = sbr.rel (0) target = $region25
  $region24: #{basic_block_forward.6} parent=0 // pred_region
    _
  $region25: #{basic_block_forward.6} parent=0 // pred_fallthru
    _
  // Predicated region
  $region26: #{basic_block_forward.6} parent=0 // pred_check
    _
  $region27: #{basic_block_forward.6} parent=0 // pred_check_branch
    %652 = sbr.rel (0) target = $region29
  $region28: #{basic_block_forward.6} parent=0 // pred_region
    _
  $region29: #{basic_block_forward.6} parent=0 // pred_fallthru
    _
  // Predicated region
  $region30: #{basic_block_forward.6} parent=0 // pred_check
    _
  $region31: #{basic_block_forward.6} parent=0 // pred_check_branch
    %654 = sbr.rel (0) target = $region33
  $region32: #{basic_block_forward.6} parent=0 // pred_region
    _
  $region33: #{basic_block_forward.6} parent=0 // pred_fallthru
    _

// kernel: basic_block_forward.7
$region0: #{basic_block_forward.7}
  #allocation0 [shape = 'u32[]', space=smem, size = 0x4, offset = 0x4, fixed_abs, tag = 'smem constant byte address 0x4 - core index']
  #allocation1 [shape = 'u32[144,128]{1,0:T(1,128)}', space=vmem, size = 0x12000, scoped, tag = 'internal scratch']
  %s0 = inlined_call_operand.vmem [shape: f32[8,128], index: 0, kind: input, shape index: {}]
  %s1 = inlined_call_operand.vmem [shape: f32[8,64], index: 1, kind: input, shape index: {}]
  %s2 = inlined_call_operand.vmem [shape: f32[64,128], index: 2, kind: input, shape index: {}]
  %s3 = inlined_call_operand.vmem [shape: f32[1,128], index: 3, kind: input, shape index: {}]
  %s4 = inlined_call_operand.vmem [shape: f32[1,128], index: 4, kind: input, shape index: {}]
  %s5 = inlined_call_operand.vmem [shape: f32[1,128], index: 5, kind: input, shape index: {}]
  %s6 = inlined_call_operand.vmem [shape: f32[1,128], index: 6, kind: input, shape index: {}]
  %s7 = inlined_call_operand.vmem [shape: f32[8,128], index: 7, kind: output, shape index: {}]
  %s8 = sld [smem:[#allocation0]]
  $region38: #{basic_block_forward.7} parent=0
    _
  %s10 = ssub.s32 1, %s8
  %s11 = scalar_select 0, %s10, %s8
  // Predicated region
  $region2: #{basic_block_forward.7} parent=0 // pred_check
    _
  $region3: #{basic_block_forward.7} parent=0 // pred_check_branch
    %13 = sbr.rel (0) target = $region5
  $region4: #{basic_block_forward.7} parent=0 // pred_region
    _
  $region5: #{basic_block_forward.7} parent=0 // pred_fallthru
    _
  // Predicated region
  $region6: #{basic_block_forward.7} parent=0 // pred_check
    _
  $region7: #{basic_block_forward.7} parent=0 // pred_check_branch
    %15 = sbr.rel (0) target = $region9
  $region8: #{basic_block_forward.7} parent=0 // pred_region
    _
  $region9: #{basic_block_forward.7} parent=0 // pred_fallthru
    _
  // Predicated region
  $region10: #{basic_block_forward.7} parent=0 // pred_check
    _
  $region11: #{basic_block_forward.7} parent=0 // pred_check_branch
    %17 = sbr.rel (0) target = $region13
  $region12: #{basic_block_forward.7} parent=0 // pred_region
    _
  $region13: #{basic_block_forward.7} parent=0 // pred_fallthru
    _
  // Predicated region
  $region14: #{basic_block_forward.7} parent=0 // pred_check
    _
  $region15: #{basic_block_forward.7} parent=0 // pred_check_branch
    %19 = sbr.rel (0) target = $region17
  $region16: #{basic_block_forward.7} parent=0 // pred_region
    _
  $region17: #{basic_block_forward.7} parent=0 // pred_fallthru
    _
  // Predicated region
  $region18: #{basic_block_forward.7} parent=0 // pred_check
    _
  $region19: #{basic_block_forward.7} parent=0 // pred_check_branch
    %21 = sbr.rel (0) target = $region21
  $region20: #{basic_block_forward.7} parent=0 // pred_region
    _
  $region21: #{basic_block_forward.7} parent=0 // pred_fallthru
    _
  // Predicated region
  $region22: #{basic_block_forward.7} parent=0 // pred_check
    _
  $region23: #{basic_block_forward.7} parent=0 // pred_check_branch
    %23 = sbr.rel (0) target = $region25
  $region24: #{basic_block_forward.7} parent=0 // pred_region
    _
  $region25: #{basic_block_forward.7} parent=0 // pred_fallthru
    _
  // Predicated region
  $region26: #{basic_block_forward.7} parent=0 // pred_check
    _
  $region27: #{basic_block_forward.7} parent=0 // pred_check_branch
    %25 = sbr.rel (0) target = $region29
  $region28: #{basic_block_forward.7} parent=0 // pred_region
    _
  $region29: #{basic_block_forward.7} parent=0 // pred_fallthru
    _
  %v26 = vld [vmem:[%s0] sm:$0xff]
  %v27 = vld [vmem:[%s3] sm:$0x1]
  %v29 = vlaneseq
  %v30 = vshrl.u32 %v29, 7
  %v31 = vsub.s32 0, %v30
  %v32 = vrot.slane %v27, %v31
  %v34 = vmul.f32 %v26, %v32
  %v35 = vld [vmem:[%s4] sm:$0x1]
  %v37 = vlaneseq
  %v38 = vshrl.u32 %v37, 7
  %v39 = vsub.s32 0, %v38
  %v40 = vrot.slane %v35, %v39
  %v42 = vadd.f32 %v34, %v40
  %v43 = vld [vmem:[%s1] sm:$0xff]
  %v44 = vld [vmem:[%s2] sm:$0xff]
  %v45 = vld [vmem:[%s2 + $0x8] sm:$0xff]
  %v46 = vld [vmem:[%s2 + $0x10] sm:$0xff]
  %v47 = vld [vmem:[%s2 + $0x18] sm:$0xff]
  %v48 = vld [vmem:[%s2 + $0x20] sm:$0xff]
  %v49 = vld [vmem:[%s2 + $0x28] sm:$0xff]
  %v50 = vld [vmem:[%s2 + $0x30] sm:$0xff]
  %v51 = vld [vmem:[%s2 + $0x38] sm:$0xff]
  %vm52 = vcmask 523264
  %v54 = vsel %vm52, %v43, 0
  %56 = vmatprep.subr.mxu0 0.0
  %57 = vmatpush1.msra.mxu0 0.0
  %58 = vmatprep.subr.mxu0 0.0
  %59 = vmatpush1.msra.mxu0 0.0
  %60 = vmatprep.subr.mxu0 0.0
  %61 = vmatpush1.msra.mxu0 0.0
  %62 = vmatprep.subr.mxu0 0.0
  %63 = vmatpush1.msra.mxu0 0.0
  %64 = vmatprep.subr.mxu0 0.0
  %65 = vmatpush1.msra.mxu0 0.0
  %66 = vmatprep.subr.mxu0 0.0
  %67 = vmatpush1.msra.mxu0 0.0
  %68 = vmatprep.subr.mxu0 0.0
  %69 = vmatpush1.msra.mxu0 0.0
  %70 = vmatprep.subr.mxu0 0.0
  %71 = vmatpush1.msra.mxu0 0.0
  %72 = vmatprep.subr.mxu0 0.0
  %73 = vmatpush1.msra.mxu0 %v51
  %74 = vmatprep.subr.mxu0 0.0
  %75 = vmatpush1.msra.mxu0 %v50
  %76 = vmatprep.subr.mxu0 0.0
  %77 = vmatpush1.msra.mxu0 %v49
  %78 = vmatprep.subr.mxu0 0.0
  %79 = vmatpush1.msra.mxu0 %v48
  %80 = vmatprep.subr.mxu0 0.0
  %81 = vmatpush1.msra.mxu0 %v47
  %82 = vmatprep.subr.mxu0 0.0
  %83 = vmatpush1.msra.mxu0 %v46
  %84 = vmatprep.subr.mxu0 0.0
  %85 = vmatpush1.msra.mxu0 %v45
  %86 = vmatprep.subr.mxu0 0.0
  %87 = vmatpush1.msra.mxu0 %v44
  %88 = vmatprep.subr.mxu0 0.0
  %89 = vmatpush2.msra.mxu0 0.0
  %90 = vmatprep.subr.mxu0 0.0
  %91 = vmatpush2.msra.mxu0 0.0
  %92 = vmatprep.subr.mxu0 0.0
  %93 = vmatpush2.msra.mxu0 0.0
  %94 = vmatprep.subr.mxu0 0.0
  %95 = vmatpush2.msra.mxu0 0.0
  %96 = vmatprep.subr.mxu0 0.0
  %97 = vmatpush2.msra.mxu0 0.0
  %98 = vmatprep.subr.mxu0 0.0
  %99 = vmatpush2.msra.mxu0 0.0
  %100 = vmatprep.subr.mxu0 0.0
  %101 = vmatpush2.msra.mxu0 0.0
  %102 = vmatprep.subr.mxu0 0.0
  %103 = vmatpush2.msra.mxu0 0.0
  %104 = vmatprep.subr.mxu0 0.0
  %105 = vmatpush2.msra.mxu0 0.0
  %106 = vmatprep.subr.mxu0 0.0
  %107 = vmatpush2.msra.mxu0 0.0
  %108 = vmatprep.subr.mxu0 0.0
  %109 = vmatpush2.msra.mxu0 0.0
  %110 = vmatprep.subr.mxu0 0.0
  %111 = vmatpush2.msra.mxu0 0.0
  %112 = vmatprep.subr.mxu0 0.0
  %113 = vmatpush2.msra.mxu0 0.0
  %114 = vmatprep.subr.mxu0 0.0
  %115 = vmatpush2.msra.mxu0 0.0
  %116 = vmatprep.subr.mxu0 0.0
  %117 = vmatpush2.msra.mxu0 0.0
  %118 = vmatprep.subr.mxu0 0.0
  %119 = vmatpush2.msra.mxu0 0.0
  %120 = vmatprep.mubr.f32.mxu0 0.0
  %121 = vmatmul.mubr.f32.gmra.mxu0 %v54
  %v122 = vpop.f32.mrf.mxu0
  %v123 = vadd.f32 0.0, %v122
  %v124 = vpop.f32.mrf.mxu0
  %125 = vdwg.mxu0
  %v126 = vld [vmem:[%s5] sm:$0x1]
  %v128 = vlaneseq
  %v129 = vshrl.u32 %v128, 7
  %v130 = vsub.s32 0, %v129
  %v131 = vrot.slane %v126, %v130
  %v133 = vmul.f32 %v123, %v131
  %v134 = vadd.f32 %v42, %v133
  %v135 = vld [vmem:[%s6] sm:$0x1]
  %v137 = vlaneseq
  %v138 = vshrl.u32 %v137, 7
  %v139 = vsub.s32 0, %v138
  %v140 = vrot.slane %v135, %v139
  %v142 = vadd.f32 %v134, %v140
  %v143 = vmax.f32 %v142, 0.0
  %144 = vst [vmem:[%s7] sm:$0xff] %v143
  // Predicated region
  $region30: #{basic_block_forward.7} parent=0 // pred_check
    _
  $region31: #{basic_block_forward.7} parent=0 // pred_check_branch
    %146 = sbr.rel (0) target = $region33
  $region32: #{basic_block_forward.7} parent=0 // pred_region
    _
  $region33: #{basic_block_forward.7} parent=0 // pred_fallthru
    _
  // Predicated region
  $region34: #{basic_block_forward.7} parent=0 // pred_check
    _
  $region35: #{basic_block_forward.7} parent=0 // pred_check_branch
    %148 = sbr.rel (0) target = $region37
  $region36: #{basic_block_forward.7} parent=0 // pred_region
    _
  $region37: #{basic_block_forward.7} parent=0 // pred_fallthru
    _

</llo_original>
